<compile_context>
chip_gen: v7x
topology: tpu7x:2x2x1
jax: 0.10.0
libtpu: 0.0.40
codegen_flags: <defaults>
</compile_context>

<pallas_src>
from functools import partial

import numpy as np
import jax
import jax.numpy as jnp
from jax.experimental import pallas as pl
from jax.experimental.pallas import tpu as pltpu

_NEG = -1e30  # stands in for the -inf padding of MaxPool1d


# ----------------------------------------------------------------------------
# Phase 1: fused branch compute + BN partial statistics (grid = (N, L tiles))
# ----------------------------------------------------------------------------
def _make_phase1_kernel(kernel_sizes, bottleneck_dim, L, TL, HALO):
    Kmax = max(kernel_sizes)
    Lp = (Kmax - 1) // 2          # shared left "same" pad of the y-section taps
    Kmp = bottleneck_dim          # kernel size of the bottleneck_mp ConvUnit
    Lmp = (Kmp - 1) // 2
    W = TL + 2 * HALO             # haloed window width

    def kernel(x_ref, wb_ref, bb_ref, wbig_ref, z_ref, stats_ref, im2col_ref):
        Cin = x_ref.shape[1]
        bneck = wb_ref.shape[0]
        t = pl.program_id(1)
        start = pl.multiple_of(t * TL, TL)        # 128-aligned window base

        # One aligned dynamic-offset load of the haloed window (+1 column on
        # each side for the maxpool neighbours).  x stays resident in VMEM
        # across all length tiles of this batch element.
        xwide = x_ref[0, :, pl.ds(start, W + 2)]            # (Cin, W+2) f32
        xl = xwide[:, 0:W]          # value at global position g - 1
        xc = xwide[:, 1:W + 1]      # value at g
        xr = xwide[:, 2:W + 2]      # value at g + 1

        # Global position of every window column + validity masks: these stand
        # in for the zero / -inf padding of the reference module.
        g = t * TL - HALO + jax.lax.broadcasted_iota(jnp.int32, (1, W), 1)
        valid = (g >= 0) & (g < L)

        # Bottleneck 1x1 conv over the haloed window (tiny matmul).
        y = jnp.dot(wb_ref[...], xc,
                    preferred_element_type=jnp.float32) + bb_ref[...]
        y = jnp.where(valid, y, 0.0)              # conv zero padding on y

        # MaxPool1d(kernel_size=3, stride=1, padding=1) without a halo scratch.
        xm = jnp.maximum(
            jnp.maximum(jnp.where(valid, xc, _NEG),
                        jnp.where((g >= 1) & (g <= L), xl, _NEG)),
            jnp.where((g >= -1) & (g < L - 1), xr, _NEG))
        xm = jnp.where(valid, xm, 0.0)            # conv zero padding on maxpool(x)

        # im2col tile: every tap is ONE full-width, lane-aligned store of a
        # static slice of the haloed window (no masked edge stores).
        ysrc = y.astype(im2col_ref.dtype)
        msrc = xm.astype(im2col_ref.dtype)
        for s in range(Kmax):
            off = s - Lp + HALO
            im2col_ref[s * bneck:(s + 1) * bneck, :] = ysrc[:, off:off + TL]
        for u in range(Kmp):
            off = u - Lmp + HALO
            r0 = Kmax * bneck + u * Cin
            im2col_ref[r0:r0 + Cin, :] = msrc[:, off:off + TL]

        # One fused bf16 MXU contraction produces every branch at once
        # (f32 accumulation).  astype is a no-op when the scratch is bf16.
        # TODO(synk): on v5e, if profiling shows vmatmul saturation, split the
        # contraction by kernel size to skip the structural zeros in wbig.
        z = jnp.dot(wbig_ref[...], im2col_ref[...].astype(jnp.bfloat16),
                    preferred_element_type=jnp.float32)

        # Mask the padded tail of the last tile so it pollutes neither the BN
        # statistics nor the stored activations.
        gout = t * TL + jax.lax.broadcasted_iota(jnp.int32, (1, TL), 1)
        z = jnp.where(gout < L, z, 0.0)

        z_ref[0] = z.astype(z_ref.dtype)          # bf16 writeback (re-read in phase 2)

        # BatchNorm partial statistics for this (batch, tile) block.
        # TODO(synk): shifted/Welford accumulation + lane-dense layout if the
        # E[z^2]-E[z]^2 cancellation ever matters; the data here is tiny.
        stats_ref[0, 0, :, 0:1] = jnp.sum(z, axis=1, keepdims=True)
        stats_ref[0, 0, :, 1:2] = jnp.sum(z * z, axis=1, keepdims=True)

    return kernel


# ----------------------------------------------------------------------------
# Phase 2: apply BatchNorm with the global batch statistics
# ----------------------------------------------------------------------------
def _phase2_kernel(z_ref, scale_ref, shift_ref, o_ref):
    o_ref[...] = z_ref[...].astype(jnp.float32) * scale_ref[...] + shift_ref[...]


# ----------------------------------------------------------------------------
# Weight packing: torch-layout conv weights -> single block matrix (Cout, Dc)
# The per-branch conv biases are intentionally dropped: under training-mode
# BatchNorm (batch statistics) a per-channel constant cancels exactly.
# ----------------------------------------------------------------------------
def _pack_weights(params, kernel_sizes, bottleneck_dim, cin, out_channels):
    K = len(kernel_sizes)
    Kmax = max(kernel_sizes)
    Lp = (Kmax - 1) // 2
    Kmp = bottleneck_dim
    bneck = int(np.asarray(params['wb']).shape[0])
    out_per = out_channels // (K + 1)
    Dc = Kmax * bneck + Kmp * cin

    wbig = np.zeros((out_channels, Dc), np.float32)
    for i, k in enumerate(kernel_sizes):
        w = np.asarray(params['ws'][i], np.float32)          # (out_per, bneck, k)
        off = Lp - (k - 1) // 2
        for t in range(k):
            s = off + t
            wbig[i * out_per:(i + 1) * out_per,
                 s * bneck:(s + 1) * bneck] = w[:, :, t]
    wmp = np.asarray(params['wmp'], np.float32)               # (out_per, Cin, Kmp)
    for t in range(Kmp):
        c0 = Kmax * bneck + t * cin
        wbig[K * out_per:(K + 1) * out_per, c0:c0 + cin] = wmp[:, :, t]
    return jnp.asarray(wbig, jnp.bfloat16)


# ----------------------------------------------------------------------------
# Per-generation VMEM budgeting and tile-length selection
# ----------------------------------------------------------------------------
def _vmem_capacity_bytes():
    try:
        info = pltpu.get_tpu_info()
        cap = int(getattr(info, "vmem_capacity_bytes", 0) or 0)
        if cap > 0:
            return cap
    except Exception:
        pass
    return 64 * 1024 * 1024  # conservative default (v7x per-TensorCore VMEM)


def _plan_tiling(L, Cin, Cout, bneck, kernel_sizes, bottleneck_dim):
    Kmax = max(kernel_sizes)
    Lp, Rp = (Kmax - 1) // 2, Kmax // 2
    Kmp = bottleneck_dim
    Lmp, Rmp = (Kmp - 1) // 2, Kmp // 2
    halo = max(Lp, Rp, Lmp + 1, Rmp + 1)
    Dc = Kmax * bneck + Kmp * Cin

    cap = _vmem_capacity_bytes()
    vmem_limit = int(0.85 * cap)     # ~54 MiB on v7x, ~108 MiB on v5e/v6e
    budget = int(0.6 * vmem_limit)   # headroom for double buffers / spills

    pack_bf16 = (bneck % 16 == 0) and (Cin % 16 == 0)
    sc_bytes = 2 if pack_bf16 else 4

    l128 = ((L + 127) // 128) * 128
    tl = 128
    for cand in (128, 256, 512, 1024, 2048, 4096):
        if cand > l128:
            break
        nt = -(-L // cand)
        W = cand + 2 * halo
        est = (2 * Cin * (nt * cand + 2 * (halo + 1)) * 4   # resident x (x2 bufs)
               + 2 * Cout * Dc * 2                           # packed weight (x2)
               + 2 * Cout * cand * 2 + 2 * Cout * 2 * 4      # z / stats out blocks
               + Dc * cand * sc_bytes                        # im2col scratch
               + (bneck + 4 * Cin) * W * 4                   # window working values
               + 2 * Cout * cand * 4)                        # f32 z value + slack
        if est <= budget:
            tl = cand
    return tl, halo, vmem_limit


# ----------------------------------------------------------------------------
# Jitted forward (two pallas_calls + tiny XLA glue for the BN reduction)
# ----------------------------------------------------------------------------
@partial(jax.jit, static_argnames=("kernel_sizes", "bottleneck_dim", "tl",
                                   "halo", "vmem_limit", "eps"))
def _inception_forward_impl(x, wb, bb, wbig, gamma, beta, *, kernel_sizes,
                            bottleneck_dim, tl, halo, vmem_limit, eps=1e-5):
    N, Cin, L = x.shape
    Cout, Dc = wbig.shape
    bneck = wb.shape[0]
    NT = -(-L // tl)
    Lt = NT * tl
    Lx = Lt + 2 * (halo + 1)

    xp = jnp.pad(x.astype(jnp.float32),
                 ((0, 0), (0, 0), (halo + 1, Lx - L - (halo + 1))))

    pack_bf16 = (bneck % 16 == 0) and (Cin % 16 == 0)
    sc_dtype = jnp.bfloat16 if pack_bf16 else jnp.float32

    cparams = pltpu.CompilerParams(
        dimension_semantics=("parallel", "parallel"),
        vmem_limit_bytes=vmem_limit)

    kernel1 = _make_phase1_kernel(kernel_sizes, bottleneck_dim, L, tl, halo)
    flops1 = 2 * N * NT * (Cout * Dc * tl + bneck * Cin * (tl + 2 * halo))
    bytes1 = (N * Cin * Lx * 4 + Cout * Dc * 2
              + N * Cout * Lt * 2 + N * NT * Cout * 2 * 4)

    z, stats = pl.pallas_call(
        kernel1,
        out_shape=(jax.ShapeDtypeStruct((N, Cout, Lt), jnp.bfloat16),
                   jax.ShapeDtypeStruct((N, NT, Cout, 2), jnp.float32)),
        grid=(N, NT),
        in_specs=[pl.BlockSpec((1, Cin, Lx), lambda n, t: (n, 0, 0)),  # resident x
                  pl.BlockSpec((bneck, Cin), lambda n, t: (0, 0)),
                  pl.BlockSpec((bneck, 1), lambda n, t: (0, 0)),
                  pl.BlockSpec((Cout, Dc), lambda n, t: (0, 0))],
        out_specs=(pl.BlockSpec((1, Cout, tl), lambda n, t: (n, 0, t)),
                   pl.BlockSpec((1, 1, Cout, 2), lambda n, t: (n, t, 0, 0))),
        scratch_shapes=[pltpu.VMEM((Dc, tl), sc_dtype)],
        compiler_params=cparams,
        cost_estimate=pl.CostEstimate(flops=int(flops1), transcendentals=0,
                                      bytes_accessed=int(bytes1)),
    )(xp, wb, bb, wbig)

    # Training-mode BatchNorm1d statistics over (batch, length).
    count = float(N * L)
    s = jnp.sum(stats[..., 0], axis=(0, 1))
    ss = jnp.sum(stats[..., 1], axis=(0, 1))
    mean = s / count
    # TODO(synk): E[z^2]-E[z]^2 can cancel catastrophically for huge N*L with
    # mean^2 >> var; use a shifted two-pass reduction if that regime matters.
    var = jnp.maximum(ss / count - mean * mean, 0.0)
    inv = jax.lax.rsqrt(var + eps)
    scale = (gamma * inv).reshape(1, Cout, 1).astype(jnp.float32)
    shift = (beta - mean * gamma * inv).reshape(1, Cout, 1).astype(jnp.float32)

    # Phase 2: out = z*scale + shift.  Block several batch elements per step so
    # this memory-bound pass is not dominated by per-step overhead.
    b2 = 1
    for cand in range(N, 0, -1):
        if N % cand == 0 and cand * Cout * tl * 6 <= (4 << 20):
            b2 = cand
            break

    out = pl.pallas_call(
        _phase2_kernel,
        out_shape=jax.ShapeDtypeStruct((N, Cout, Lt), jnp.float32),
        grid=(N // b2, NT),
        in_specs=[pl.BlockSpec((b2, Cout, tl), lambda b, t: (b, 0, t)),
                  pl.BlockSpec((1, Cout, 1), lambda b, t: (0, 0, 0)),
                  pl.BlockSpec((1, Cout, 1), lambda b, t: (0, 0, 0))],
        out_specs=pl.BlockSpec((b2, Cout, tl), lambda b, t: (b, 0, t)),
        compiler_params=cparams,
    )(z, scale, shift)

    return out[:, :, :L]


def inception_forward(x, params, kernel_sizes, bottleneck_dim, out_channels):
    N, Cin, L = x.shape
    bneck = int(np.asarray(params['wb']).shape[0])
    wbig = _pack_weights(params, list(kernel_sizes), bottleneck_dim,
                         Cin, out_channels)
    tl, halo, vmem_limit = _plan_tiling(L, Cin, out_channels, bneck,
                                        list(kernel_sizes), bottleneck_dim)
    # NOTE: params['bs'] / params['bmp'] are not needed by the kernels — these
    # per-channel constants cancel exactly under training-mode BatchNorm.
    return _inception_forward_impl(
        x.astype(jnp.float32),
        jnp.asarray(params['wb'], jnp.float32),
        jnp.asarray(params['bb'], jnp.float32).reshape(-1, 1),
        wbig,
        jnp.asarray(params['gamma'], jnp.float32),
        jnp.asarray(params['beta'], jnp.float32),
        kernel_sizes=tuple(kernel_sizes),
        bottleneck_dim=bottleneck_dim,
        tl=tl, halo=halo, vmem_limit=vmem_limit)


# ----------------------------------------------------------------------------
# Pure-JAX reference mirroring the PyTorch module's forward (training mode)
# ----------------------------------------------------------------------------
def _ref_forward(x, params, kernel_sizes, bottleneck_dim, eps=1e-5):
    N, Cin, L = x.shape

    def conv_same(z, w, b):                    # z (N,C,L), w (O,C,k)
        k = w.shape[2]
        left, right = (k - 1) // 2, k // 2
        zp = jnp.pad(z, ((0, 0), (0, 0), (left, right)))
        out = jnp.zeros((N, w.shape[0], L), jnp.float32)
        for t in range(k):
            out = out + jnp.einsum('oc,ncl->nol', w[:, :, t], zp[:, :, t:t + L])
        return out + b[None, :, None]

    y = jnp.einsum('oc,ncl->nol', params['wb'], x) + params['bb'][None, :, None]
    branches = [conv_same(y, w, b) for w, b in zip(params['ws'], params['bs'])]

    xp = jnp.pad(x, ((0, 0), (0, 0), (1, 1)), constant_values=-jnp.inf)
    xm = jnp.maximum(jnp.maximum(xp[:, :, 0:L], xp[:, :, 1:1 + L]), xp[:, :, 2:2 + L])
    branches.append(conv_same(xm, params['wmp'], params['bmp']))

    z = jnp.concatenate(branches, axis=1)
    mean = jnp.mean(z, axis=(0, 2), keepdims=True)
    var = jnp.mean((z - mean) ** 2, axis=(0, 2), keepdims=True)
    zhat = (z - mean) / jnp.sqrt(var + eps)
    return zhat * params['gamma'][None, :, None] + params['beta'][None, :, None]


if __name__ == "__main__":
    # Small shapes; L=300 forces multiple length tiles so the halo / tail
    # masking paths are exercised (plan picks TL=256 -> 2 tiles).
    N, Cin, L = 2, 4, 300
    kernel_sizes = (3, 5, 7)
    out_channels = 8                       # divisible by K+1 = 4 -> out_per = 2
    bottleneck_dim = 4
    K = len(kernel_sizes)
    out_per = out_channels // (K + 1)

    def _q(w):
        # Round conv weights to the bf16 grid so the bf16-fed kernel and the
        # f32 reference see identical effective weights (tight self-check).
        return jnp.asarray(w, jnp.bfloat16).astype(jnp.float32)

    ks = jax.random.split(jax.random.PRNGKey(0), 12)
    params = {
        'wb': 0.2 * jax.random.normal(ks[0], (bottleneck_dim, Cin), jnp.float32),
        'bb': 0.1 * jax.random.normal(ks[1], (bottleneck_dim,), jnp.float32),
        'ws': [_q(0.2 * jax.random.normal(ks[2 + i], (out_per, bottleneck_dim, k),
                                          jnp.float32))
               for i, k in enumerate(kernel_sizes)],
        'bs': [0.1 * jax.random.normal(ks[2 + K + i], (out_per,), jnp.float32)
               for i in range(K)],
        'wmp': _q(0.2 * jax.random.normal(ks[2 + 2 * K], (out_per, Cin, bottleneck_dim),
                                          jnp.float32)),
        'bmp': 0.1 * jax.random.normal(ks[3 + 2 * K], (out_per,), jnp.float32),
        'gamma': 1.0 + 0.1 * jax.random.normal(ks[4 + 2 * K], (out_channels,), jnp.float32),
        'beta': 0.1 * jax.random.normal(ks[5 + 2 * K], (out_channels,), jnp.float32),
    }
    x = jax.random.normal(ks[6 + 2 * K], (N, Cin, L), jnp.float32)

    out = inception_forward(x, params, kernel_sizes, bottleneck_dim, out_channels)
    out = jax.block_until_ready(out)

    ref = _ref_forward(x, params, list(kernel_sizes), bottleneck_dim)
    # bf16 im2col / bf16 activation writeback vs f32 reference -> bf16-level tol.
    if out.shape != ref.shape or not np.allclose(np.asarray(out), np.asarray(ref),
                                                 atol=3e-2, rtol=3e-2):
        raise SystemExit("mismatch vs reference")
    print("KERNEL_OK")
</pallas_src>

<mosaic_0001>
module attributes {stable_mosaic.version = 11 : i64} {
  func.func @kernel(%arg0: i32, %arg1: i32, %arg2: memref<1x4x520xf32, #tpu.memory_space<vmem>>, %arg3: memref<4x4xf32, #tpu.memory_space<vmem>>, %arg4: memref<4x1xf32, #tpu.memory_space<vmem>>, %arg5: memref<8x44xbf16, #tpu.memory_space<vmem>>, %arg6: memref<1x8x256xbf16, #tpu.memory_space<vmem>>, %arg7: memref<1x1x8x2xf32, #tpu.memory_space<vmem>>, %arg8: memref<44x256xf32, #tpu.memory_space<vmem>>) attributes {dimension_semantics = [#tpu.dimension_semantics<parallel>, #tpu.dimension_semantics<parallel>], iteration_bounds = array<i64: 2, 2>, scalar_prefetch = 0 : i64, scratch_operands = 1 : i64, tpu.core_type = #tpu.core_type<tc>, window_params = [{transform_indices = @transform_0, window_bounds = array<i64: 1, 4, 520>}, {pipeline_mode = #tpu.pipeline_mode<synchronous>, transform_indices = @transform_1, window_bounds = array<i64: 4, 4>}, {pipeline_mode = #tpu.pipeline_mode<synchronous>, transform_indices = @transform_2, window_bounds = array<i64: 4, 1>}, {pipeline_mode = #tpu.pipeline_mode<synchronous>, transform_indices = @transform_3, window_bounds = array<i64: 8, 44>}, {transform_indices = @transform_4, window_bounds = array<i64: 1, 8, 256>}, {transform_indices = @transform_5, window_bounds = array<i64: 1, 1, 8, 2>}]} {
    %c256_i32 = arith.constant 256 : i32
    %0 = arith.muli %arg1, %c256_i32 : i32
    %1 = tpu.assume_multiple %0, 256 : i32
    %c0 = arith.constant 0 : index
    %c0_0 = arith.constant 0 : index
    %2 = arith.index_cast %1 : i32 to index
    %3 = vector.load %arg2[%c0, %c0_0, %2] : memref<1x4x520xf32, #tpu.memory_space<vmem>>, vector<1x4x264xf32>
    %4 = vector.shape_cast %3 : vector<1x4x264xf32> to vector<4x264xf32>
    %5 = vector.extract_strided_slice %4 {offsets = [0, 0], sizes = [4, 262], strides = [1, 1]} : vector<4x264xf32> to vector<4x262xf32>
    %6 = vector.extract_strided_slice %4 {offsets = [0, 1], sizes = [4, 262], strides = [1, 1]} : vector<4x264xf32> to vector<4x262xf32>
    %7 = vector.extract_strided_slice %4 {offsets = [0, 2], sizes = [4, 262], strides = [1, 1]} : vector<4x264xf32> to vector<4x262xf32>
    %c256_i32_1 = arith.constant 256 : i32
    %8 = arith.muli %arg1, %c256_i32_1 : i32
    %c3_i32 = arith.constant 3 : i32
    %9 = arith.subi %8, %c3_i32 : i32
    %10 = tpu.iota {dimensions = array<i32: 1>} : vector<1x262xi32>
    %11 = vector.broadcast %9 : i32 to vector<1x262xi32>
    %12 = arith.addi %11, %10 : vector<1x262xi32>
    %c0_i32 = arith.constant 0 : i32
    %13 = vector.broadcast %c0_i32 : i32 to vector<1x262xi32>
    %14 = arith.cmpi sge, %12, %13 : vector<1x262xi32>
    %c300_i32 = arith.constant 300 : i32
    %15 = vector.broadcast %c300_i32 : i32 to vector<1x262xi32>
    %16 = arith.cmpi slt, %12, %15 : vector<1x262xi32>
    %17 = arith.andi %14, %16 : vector<1x262xi1>
    %c0_2 = arith.constant 0 : index
    %c0_3 = arith.constant 0 : index
    %18 = vector.load %arg3[%c0_2, %c0_3] : memref<4x4xf32, #tpu.memory_space<vmem>>, vector<4x4xf32>
    %cst = arith.constant dense<0.000000e+00> : vector<4x262xf32>
    %19 = tpu.matmul %18, %6, %cst {dimension_numbers = #tpu.dot_dimension_numbers<[1], [0], [0], [1], [0, 0, 1, 1], [], []>} : vector<4x4xf32>, vector<4x262xf32>, vector<4x262xf32> -> vector<4x262xf32>
    %c0_4 = arith.constant 0 : index
    %c0_5 = arith.constant 0 : index
    %20 = vector.load %arg4[%c0_4, %c0_5] : memref<4x1xf32, #tpu.memory_space<vmem>>, vector<4x1xf32>
    %21 = vector.broadcast %20 : vector<4x1xf32> to vector<4x262xf32>
    %22 = arith.addf %19, %21 : vector<4x262xf32>
    %cst_6 = arith.constant 0.000000e+00 : f32
    %23 = vector.shape_cast %17 : vector<1x262xi1> to vector<1x262xi1>
    %24 = vector.broadcast %23 : vector<1x262xi1> to vector<4x262xi1>
    %25 = vector.broadcast %cst_6 : f32 to vector<4x262xf32>
    %26 = arith.select %24, %22, %25 : vector<4x262xi1>, vector<4x262xf32>
    %cst_7 = arith.constant -1.000000e+30 : f32
    %27 = vector.shape_cast %17 : vector<1x262xi1> to vector<1x262xi1>
    %28 = vector.broadcast %27 : vector<1x262xi1> to vector<4x262xi1>
    %29 = vector.broadcast %cst_7 : f32 to vector<4x262xf32>
    %30 = arith.select %28, %6, %29 : vector<4x262xi1>, vector<4x262xf32>
    %c1_i32 = arith.constant 1 : i32
    %31 = vector.broadcast %c1_i32 : i32 to vector<1x262xi32>
    %32 = arith.cmpi sge, %12, %31 : vector<1x262xi32>
    %c300_i32_8 = arith.constant 300 : i32
    %33 = vector.broadcast %c300_i32_8 : i32 to vector<1x262xi32>
    %34 = arith.cmpi sle, %12, %33 : vector<1x262xi32>
    %35 = arith.andi %32, %34 : vector<1x262xi1>
    %cst_9 = arith.constant -1.000000e+30 : f32
    %36 = vector.shape_cast %35 : vector<1x262xi1> to vector<1x262xi1>
    %37 = vector.broadcast %36 : vector<1x262xi1> to vector<4x262xi1>
    %38 = vector.broadcast %cst_9 : f32 to vector<4x262xf32>
    %39 = arith.select %37, %5, %38 : vector<4x262xi1>, vector<4x262xf32>
    %40 = arith.maximumf %30, %39 : vector<4x262xf32>
    %c-1_i32 = arith.constant -1 : i32
    %41 = vector.broadcast %c-1_i32 : i32 to vector<1x262xi32>
    %42 = arith.cmpi sge, %12, %41 : vector<1x262xi32>
    %c299_i32 = arith.constant 299 : i32
    %43 = vector.broadcast %c299_i32 : i32 to vector<1x262xi32>
    %44 = arith.cmpi slt, %12, %43 : vector<1x262xi32>
    %45 = arith.andi %42, %44 : vector<1x262xi1>
    %cst_10 = arith.constant -1.000000e+30 : f32
    %46 = vector.shape_cast %45 : vector<1x262xi1> to vector<1x262xi1>
    %47 = vector.broadcast %46 : vector<1x262xi1> to vector<4x262xi1>
    %48 = vector.broadcast %cst_10 : f32 to vector<4x262xf32>
    %49 = arith.select %47, %7, %48 : vector<4x262xi1>, vector<4x262xf32>
    %50 = arith.maximumf %40, %49 : vector<4x262xf32>
    %cst_11 = arith.constant 0.000000e+00 : f32
    %51 = vector.shape_cast %17 : vector<1x262xi1> to vector<1x262xi1>
    %52 = vector.broadcast %51 : vector<1x262xi1> to vector<4x262xi1>
    %53 = vector.broadcast %cst_11 : f32 to vector<4x262xf32>
    %54 = arith.select %52, %50, %53 : vector<4x262xi1>, vector<4x262xf32>
    %55 = vector.extract_strided_slice %26 {offsets = [0, 0], sizes = [4, 256], strides = [1, 1]} : vector<4x262xf32> to vector<4x256xf32>
    %c0_12 = arith.constant 0 : index
    %c0_13 = arith.constant 0 : index
    %56 = vector.load %arg8[%c0_12, %c0_13] : memref<44x256xf32, #tpu.memory_space<vmem>>, vector<4x256xf32>
    tpu.vector_store %arg8[%c0_12, %c0_13], %55 {strides = array<i32>} : memref<44x256xf32, #tpu.memory_space<vmem>>, vector<4x256xf32>,
    %57 = vector.extract_strided_slice %26 {offsets = [0, 1], sizes = [4, 256], strides = [1, 1]} : vector<4x262xf32> to vector<4x256xf32>
    %c4 = arith.constant 4 : index
    %c0_14 = arith.constant 0 : index
    %58 = vector.load %arg8[%c4, %c0_14] : memref<44x256xf32, #tpu.memory_space<vmem>>, vector<4x256xf32>
    tpu.vector_store %arg8[%c4, %c0_14], %57 {strides = array<i32>} : memref<44x256xf32, #tpu.memory_space<vmem>>, vector<4x256xf32>,
    %59 = vector.extract_strided_slice %26 {offsets = [0, 2], sizes = [4, 256], strides = [1, 1]} : vector<4x262xf32> to vector<4x256xf32>
    %c8 = arith.constant 8 : index
    %c0_15 = arith.constant 0 : index
    %60 = vector.load %arg8[%c8, %c0_15] : memref<44x256xf32, #tpu.memory_space<vmem>>, vector<4x256xf32>
    tpu.vector_store %arg8[%c8, %c0_15], %59 {strides = array<i32>} : memref<44x256xf32, #tpu.memory_space<vmem>>, vector<4x256xf32>,
    %61 = vector.extract_strided_slice %26 {offsets = [0, 3], sizes = [4, 256], strides = [1, 1]} : vector<4x262xf32> to vector<4x256xf32>
    %c12 = arith.constant 12 : index
    %c0_16 = arith.constant 0 : index
    %62 = vector.load %arg8[%c12, %c0_16] : memref<44x256xf32, #tpu.memory_space<vmem>>, vector<4x256xf32>
    tpu.vector_store %arg8[%c12, %c0_16], %61 {strides = array<i32>} : memref<44x256xf32, #tpu.memory_space<vmem>>, vector<4x256xf32>,
    %63 = vector.extract_strided_slice %26 {offsets = [0, 4], sizes = [4, 256], strides = [1, 1]} : vector<4x262xf32> to vector<4x256xf32>
    %c16 = arith.constant 16 : index
    %c0_17 = arith.constant 0 : index
    %64 = vector.load %arg8[%c16, %c0_17] : memref<44x256xf32, #tpu.memory_space<vmem>>, vector<4x256xf32>
    tpu.vector_store %arg8[%c16, %c0_17], %63 {strides = array<i32>} : memref<44x256xf32, #tpu.memory_space<vmem>>, vector<4x256xf32>,
    %65 = vector.extract_strided_slice %26 {offsets = [0, 5], sizes = [4, 256], strides = [1, 1]} : vector<4x262xf32> to vector<4x256xf32>
    %c20 = arith.constant 20 : index
    %c0_18 = arith.constant 0 : index
    %66 = vector.load %arg8[%c20, %c0_18] : memref<44x256xf32, #tpu.memory_space<vmem>>, vector<4x256xf32>
    tpu.vector_store %arg8[%c20, %c0_18], %65 {strides = array<i32>} : memref<44x256xf32, #tpu.memory_space<vmem>>, vector<4x256xf32>,
    %67 = vector.extract_strided_slice %26 {offsets = [0, 6], sizes = [4, 256], strides = [1, 1]} : vector<4x262xf32> to vector<4x256xf32>
    %c24 = arith.constant 24 : index
    %c0_19 = arith.constant 0 : index
    %68 = vector.load %arg8[%c24, %c0_19] : memref<44x256xf32, #tpu.memory_space<vmem>>, vector<4x256xf32>
    tpu.vector_store %arg8[%c24, %c0_19], %67 {strides = array<i32>} : memref<44x256xf32, #tpu.memory_space<vmem>>, vector<4x256xf32>,
    %69 = vector.extract_strided_slice %54 {offsets = [0, 2], sizes = [4, 256], strides = [1, 1]} : vector<4x262xf32> to vector<4x256xf32>
    %c28 = arith.constant 28 : index
    %c0_20 = arith.constant 0 : index
    %70 = vector.load %arg8[%c28, %c0_20] : memref<44x256xf32, #tpu.memory_space<vmem>>, vector<4x256xf32>
    tpu.vector_store %arg8[%c28, %c0_20], %69 {strides = array<i32>} : memref<44x256xf32, #tpu.memory_space<vmem>>, vector<4x256xf32>,
    %71 = vector.extract_strided_slice %54 {offsets = [0, 3], sizes = [4, 256], strides = [1, 1]} : vector<4x262xf32> to vector<4x256xf32>
    %c32 = arith.constant 32 : index
    %c0_21 = arith.constant 0 : index
    %72 = vector.load %arg8[%c32, %c0_21] : memref<44x256xf32, #tpu.memory_space<vmem>>, vector<4x256xf32>
    tpu.vector_store %arg8[%c32, %c0_21], %71 {strides = array<i32>} : memref<44x256xf32, #tpu.memory_space<vmem>>, vector<4x256xf32>,
    %73 = vector.extract_strided_slice %54 {offsets = [0, 4], sizes = [4, 256], strides = [1, 1]} : vector<4x262xf32> to vector<4x256xf32>
    %c36 = arith.constant 36 : index
    %c0_22 = arith.constant 0 : index
    %74 = vector.load %arg8[%c36, %c0_22] : memref<44x256xf32, #tpu.memory_space<vmem>>, vector<4x256xf32>
    tpu.vector_store %arg8[%c36, %c0_22], %73 {strides = array<i32>} : memref<44x256xf32, #tpu.memory_space<vmem>>, vector<4x256xf32>,
    %75 = vector.extract_strided_slice %54 {offsets = [0, 5], sizes = [4, 256], strides = [1, 1]} : vector<4x262xf32> to vector<4x256xf32>
    %c40 = arith.constant 40 : index
    %c0_23 = arith.constant 0 : index
    %76 = vector.load %arg8[%c40, %c0_23] : memref<44x256xf32, #tpu.memory_space<vmem>>, vector<4x256xf32>
    tpu.vector_store %arg8[%c40, %c0_23], %75 {strides = array<i32>} : memref<44x256xf32, #tpu.memory_space<vmem>>, vector<4x256xf32>,
    %c0_24 = arith.constant 0 : index
    %c0_25 = arith.constant 0 : index
    %77 = vector.load %arg5[%c0_24, %c0_25] : memref<8x44xbf16, #tpu.memory_space<vmem>>, vector<8x44xbf16>
    %c0_26 = arith.constant 0 : index
    %c0_27 = arith.constant 0 : index
    %78 = vector.load %arg8[%c0_26, %c0_27] : memref<44x256xf32, #tpu.memory_space<vmem>>, vector<44x256xf32>
    %79 = arith.truncf %78 : vector<44x256xf32> to vector<44x256xbf16>
    %cst_28 = arith.constant dense<0.000000e+00> : vector<8x256xf32>
    %80 = tpu.matmul %77, %79, %cst_28 {dimension_numbers = #tpu.dot_dimension_numbers<[1], [0], [0], [1], [0, 0, 1, 1], [], []>} : vector<8x44xbf16>, vector<44x256xbf16>, vector<8x256xf32> -> vector<8x256xf32>
    %c256_i32_29 = arith.constant 256 : i32
    %81 = arith.muli %arg1, %c256_i32_29 : i32
    %82 = tpu.iota {dimensions = array<i32: 1>} : vector<1x256xi32>
    %83 = vector.broadcast %81 : i32 to vector<1x256xi32>
    %84 = arith.addi %83, %82 : vector<1x256xi32>
    %c300_i32_30 = arith.constant 300 : i32
    %85 = vector.broadcast %c300_i32_30 : i32 to vector<1x256xi32>
    %86 = arith.cmpi slt, %84, %85 : vector<1x256xi32>
    %cst_31 = arith.constant 0.000000e+00 : f32
    %87 = vector.shape_cast %86 : vector<1x256xi1> to vector<1x256xi1>
    %88 = vector.broadcast %87 : vector<1x256xi1> to vector<8x256xi1>
    %89 = vector.broadcast %cst_31 : f32 to vector<8x256xf32>
    %90 = arith.select %88, %80, %89 : vector<8x256xi1>, vector<8x256xf32>
    %91 = arith.truncf %90 : vector<8x256xf32> to vector<8x256xbf16>
    %c0_32 = arith.constant 0 : index
    %c0_33 = arith.constant 0 : index
    %c0_34 = arith.constant 0 : index
    %92 = vector.load %arg6[%c0_32, %c0_33, %c0_34] : memref<1x8x256xbf16, #tpu.memory_space<vmem>>, vector<1x8x256xbf16>
    %93 = vector.shape_cast %92 : vector<1x8x256xbf16> to vector<8x256xbf16>
    %94 = vector.shape_cast %91 : vector<8x256xbf16> to vector<1x8x256xbf16>
    tpu.vector_store %arg6[%c0_32, %c0_33, %c0_34], %94 {strides = array<i32>} : memref<1x8x256xbf16, #tpu.memory_space<vmem>>, vector<1x8x256xbf16>,
    %cst_35 = arith.constant dense<0.000000e+00> : vector<8xf32>
    %95 = vector.multi_reduction <add>, %90, %cst_35 [1] : vector<8x256xf32> to vector<8xf32>
    %96 = vector.shape_cast %95 : vector<8xf32> to vector<8x1xf32>
    %c0_36 = arith.constant 0 : index
    %c0_37 = arith.constant 0 : index
    %c0_38 = arith.constant 0 : index
    %c0_39 = arith.constant 0 : index
    %97 = vector.load %arg7[%c0_36, %c0_37, %c0_38, %c0_39] : memref<1x1x8x2xf32, #tpu.memory_space<vmem>>, vector<1x1x8x1xf32>
    %98 = vector.shape_cast %97 : vector<1x1x8x1xf32> to vector<8x1xf32>
    %99 = vector.shape_cast %96 : vector<8x1xf32> to vector<1x1x8x1xf32>
    tpu.vector_store %arg7[%c0_36, %c0_37, %c0_38, %c0_39], %99 {strides = array<i32>} : memref<1x1x8x2xf32, #tpu.memory_space<vmem>>, vector<1x1x8x1xf32>,
    %100 = arith.mulf %90, %90 : vector<8x256xf32>
    %cst_40 = arith.constant dense<0.000000e+00> : vector<8xf32>
    %101 = vector.multi_reduction <add>, %100, %cst_40 [1] : vector<8x256xf32> to vector<8xf32>
    %102 = vector.shape_cast %101 : vector<8xf32> to vector<8x1xf32>
    %c0_41 = arith.constant 0 : index
    %c0_42 = arith.constant 0 : index
    %c0_43 = arith.constant 0 : index
    %c1 = arith.constant 1 : index
    %103 = vector.load %arg7[%c0_41, %c0_42, %c0_43, %c1] : memref<1x1x8x2xf32, #tpu.memory_space<vmem>>, vector<1x1x8x1xf32>
    %104 = vector.shape_cast %103 : vector<1x1x8x1xf32> to vector<8x1xf32>
    %105 = vector.shape_cast %102 : vector<8x1xf32> to vector<1x1x8x1xf32>
    tpu.vector_store %arg7[%c0_41, %c0_42, %c0_43, %c1], %105 {strides = array<i32>} : memref<1x1x8x2xf32, #tpu.memory_space<vmem>>, vector<1x1x8x1xf32>,
    return
  }
  func.func @transform_0(%arg0: i32, %arg1: i32) -> (i32, i32, i32) {
    %c0_i32 = arith.constant 0 : i32
    %c0_i32_0 = arith.constant 0 : i32
    %c0_i32_1 = arith.constant 0 : i32
    return %arg0, %c0_i32, %c0_i32_0 : i32, i32, i32
  }
  func.func @transform_1(%arg0: i32, %arg1: i32) -> (i32, i32) {
    %c0_i32 = arith.constant 0 : i32
    %c0_i32_0 = arith.constant 0 : i32
    %c0_i32_1 = arith.constant 0 : i32
    return %c0_i32, %c0_i32_0 : i32, i32
  }
  func.func @transform_2(%arg0: i32, %arg1: i32) -> (i32, i32) {
    %c0_i32 = arith.constant 0 : i32
    %c0_i32_0 = arith.constant 0 : i32
    %c0_i32_1 = arith.constant 0 : i32
    return %c0_i32, %c0_i32_0 : i32, i32
  }
  func.func @transform_3(%arg0: i32, %arg1: i32) -> (i32, i32) {
    %c0_i32 = arith.constant 0 : i32
    %c0_i32_0 = arith.constant 0 : i32
    %c0_i32_1 = arith.constant 0 : i32
    return %c0_i32, %c0_i32_0 : i32, i32
  }
  func.func @transform_4(%arg0: i32, %arg1: i32) -> (i32, i32, i32) {
    %c0_i32 = arith.constant 0 : i32
    %c0_i32_0 = arith.constant 0 : i32
    return %arg0, %c0_i32, %arg1 : i32, i32, i32
  }
  func.func @transform_5(%arg0: i32, %arg1: i32) -> (i32, i32, i32, i32) {
    %c0_i32 = arith.constant 0 : i32
    %c0_i32_0 = arith.constant 0 : i32
    %c0_i32_1 = arith.constant 0 : i32
    return %arg0, %arg1, %c0_i32, %c0_i32_0 : i32, i32, i32, i32
  }
}

module attributes {stable_mosaic.version = 11 : i64} {
  func.func @_phase2_kernel(%arg0: i32, %arg1: i32, %arg2: memref<2x8x256xbf16, #tpu.memory_space<vmem>>, %arg3: memref<1x8x1xf32, #tpu.memory_space<vmem>>, %arg4: memref<1x8x1xf32, #tpu.memory_space<vmem>>, %arg5: memref<2x8x256xf32, #tpu.memory_space<vmem>>) attributes {dimension_semantics = [#tpu.dimension_semantics<parallel>, #tpu.dimension_semantics<parallel>], iteration_bounds = array<i64: 1, 2>, scalar_prefetch = 0 : i64, scratch_operands = 0 : i64, tpu.core_type = #tpu.core_type<tc>, window_params = [{transform_indices = @transform_0, window_bounds = array<i64: 2, 8, 256>}, {pipeline_mode = #tpu.pipeline_mode<synchronous>, transform_indices = @transform_1, window_bounds = array<i64: 1, 8, 1>}, {pipeline_mode = #tpu.pipeline_mode<synchronous>, transform_indices = @transform_2, window_bounds = array<i64: 1, 8, 1>}, {transform_indices = @transform_3, window_bounds = array<i64: 2, 8, 256>}]} {
    %c0 = arith.constant 0 : index
    %c0_0 = arith.constant 0 : index
    %c0_1 = arith.constant 0 : index
    %0 = vector.load %arg2[%c0, %c0_0, %c0_1] : memref<2x8x256xbf16, #tpu.memory_space<vmem>>, vector<2x8x256xbf16>
    %1 = arith.extf %0 : vector<2x8x256xbf16> to vector<2x8x256xf32>
    %c0_2 = arith.constant 0 : index
    %c0_3 = arith.constant 0 : index
    %c0_4 = arith.constant 0 : index
    %2 = vector.load %arg3[%c0_2, %c0_3, %c0_4] : memref<1x8x1xf32, #tpu.memory_space<vmem>>, vector<1x8x1xf32>
    %3 = vector.broadcast %2 : vector<1x8x1xf32> to vector<2x8x256xf32>
    %4 = arith.mulf %1, %3 : vector<2x8x256xf32>
    %c0_5 = arith.constant 0 : index
    %c0_6 = arith.constant 0 : index
    %c0_7 = arith.constant 0 : index
    %5 = vector.load %arg4[%c0_5, %c0_6, %c0_7] : memref<1x8x1xf32, #tpu.memory_space<vmem>>, vector<1x8x1xf32>
    %6 = vector.broadcast %5 : vector<1x8x1xf32> to vector<2x8x256xf32>
    %7 = arith.addf %4, %6 : vector<2x8x256xf32>
    %c0_8 = arith.constant 0 : index
    %c0_9 = arith.constant 0 : index
    %c0_10 = arith.constant 0 : index
    %8 = vector.load %arg5[%c0_8, %c0_9, %c0_10] : memref<2x8x256xf32, #tpu.memory_space<vmem>>, vector<2x8x256xf32>
    tpu.vector_store %arg5[%c0_8, %c0_9, %c0_10], %7 {strides = array<i32>} : memref<2x8x256xf32, #tpu.memory_space<vmem>>, vector<2x8x256xf32>,
    return
  }
  func.func @transform_0(%arg0: i32, %arg1: i32) -> (i32, i32, i32) {
    %c0_i32 = arith.constant 0 : i32
    %c0_i32_0 = arith.constant 0 : i32
    return %arg0, %c0_i32, %arg1 : i32, i32, i32
  }
  func.func @transform_1(%arg0: i32, %arg1: i32) -> (i32, i32, i32) {
    %c0_i32 = arith.constant 0 : i32
    %c0_i32_0 = arith.constant 0 : i32
    %c0_i32_1 = arith.constant 0 : i32
    %c0_i32_2 = arith.constant 0 : i32
    return %c0_i32, %c0_i32_0, %c0_i32_1 : i32, i32, i32
  }
  func.func @transform_2(%arg0: i32, %arg1: i32) -> (i32, i32, i32) {
    %c0_i32 = arith.constant 0 : i32
    %c0_i32_0 = arith.constant 0 : i32
    %c0_i32_1 = arith.constant 0 : i32
    %c0_i32_2 = arith.constant 0 : i32
    return %c0_i32, %c0_i32_0, %c0_i32_1 : i32, i32, i32
  }
  func.func @transform_3(%arg0: i32, %arg1: i32) -> (i32, i32, i32) {
    %c0_i32 = arith.constant 0 : i32
    %c0_i32_0 = arith.constant 0 : i32
    return %arg0, %c0_i32, %arg1 : i32, i32, i32
  }
}

</mosaic_0001>

<llo_original>
// kernel: _inception_forward_impl.2
$region0: #{_inception_forward_impl.2}
  #allocation0 [shape = 'u32[]', space=smem, size = 0x4, offset = 0x4, fixed_abs, tag = 'smem constant byte address 0x4 - core index']
  #allocation1 [shape = 'u32[144,128]{1,0:T(1,128)}', space=vmem, size = 0x12000, scoped, tag = 'internal scratch']
  #allocation2 [shape = 'f32[44,256]{1,0:T(8,128)}', space=vmem, size = 0xc000, scoped, tag = 'scratch operand']
  %s0 = inlined_call_operand.vmem [shape: f32[2,4,520], index: 0, kind: input, shape index: {}]
  %s1 = inlined_call_operand.vmem [shape: f32[4,4], index: 1, kind: input, shape index: {}]
  %s2 = inlined_call_operand.vmem [shape: f32[4,1], index: 2, kind: input, shape index: {}]
  %s3 = inlined_call_operand.vmem [shape: bf16[8,44], index: 3, kind: input, shape index: {}]
  %s4 = inlined_call_operand.vmem [shape: bf16[2,8,512], index: 4, kind: output, shape index: {0}]
  %s5 = inlined_call_operand.vmem [shape: f32[2,2,8,2], index: 5, kind: output, shape index: {1}]
  %6 = xla_tuple %s4, %s5
  %s7 = sld [smem:[#allocation0]]
  $region57: #{_inception_forward_impl.2} parent=0
    _
  %s9 = ssub.s32 1, %s7
  %s10 = scalar_select 0, %s9, %s7
  loop: start=0, step=1, limit=6
  $region2: #{_inception_forward_impl.2} parent=0 // loop_pre_header
    _
  $region3: #{_inception_forward_impl.2} parent=0 // loop_header
    %s12 = sphi 0, %s16
    %p13 = scmp.ge.s32.totalorder %s12, 6
    %s19 = sphi 0, %s31
    %s20 = sphi 0, %s27
    %s21 = sphi 0, %s19
    %s22 = sphi 0, %s20
    %s23 = sphi 0, %s21
    %s24 = sphi 0, %s22
    %s34 = sphi 0, %s36
    %s37 = sphi 0, %s34
    %s38 = sphi 0, %s37
    %s54 = sphi 0, %s38
    %s58 = sphi 0, %s58
    %s60 = sphi 0, %s58
    %s61 = sphi 0, %s60
    %s75 = sphi 0, %s61
    %s79 = sphi 0, %s79
    %s81 = sphi 0, %s79
    %s82 = sphi 0, %s81
    %s96 = sphi 0, %s82
    %s100 = sphi 0, %s100
    %s102 = sphi 0, %s100
    %s103 = sphi 0, %s102
    %s117 = sphi 0, %s103
    %s125 = sphi 0, %s127
    %s128 = sphi 0, %s125
    %s129 = sphi 0, %s128
    %s145 = sphi 0, %s129
    %s153 = sphi 0, %s155
    %s156 = sphi 0, %s153
    %s157 = sphi 0, %s156
    %s173 = sphi 0, %s157
  $region4: #{_inception_forward_impl.2} parent=0 // loop_header_branch
    %15 = sbr.rel (%p13) target = $region8
  $region5: #{_inception_forward_impl.2} parent=0 // loop_body
    %s17 = ssub.s32 %s12, 1
    %s18 = ssub.s32 %s12, 2
    %s25 = sadd.s32 1, %s20
    %p26 = scmp.ge.s32.totalorder %s25, 2
    %s27 = scalar_select %p26, 0, %s25
    %s28 = sadd.s32 1, %s19
    %s29 = scalar_select %p26, %s28, %s19
    %p30 = scmp.ge.s32.totalorder %s29, 2
    %s31 = scalar_select %p30, 0, %s29
    %s32 = ssub.s32 %s19, %s31
    %p33 = scmp.eq.s32.totalorder %s32, 0
    %s35 = sadd.s32 %s34, 1
    %s36 = scalar_select %p33, %s34, %s35
    %p39 = pneg %p33
    %p40 = scmp.eq.s32.totalorder %s12, 3
    %p41 = por %p39, %p40
    %p42 = scmp.ne.s32.totalorder %s34, %s37
    %p43 = scmp.eq.s32.totalorder %s12, 0
    %p44 = por %p42, %p43
    %p45 = scmp.ne.s32.totalorder %s34, %s37
    %p46 = scmp.eq.s32.totalorder %s17, 3
    %p47 = por %p45, %p46
    %p48 = scmp.ne.s32.totalorder %s37, %s38
    %p49 = scmp.eq.s32.totalorder %s17, 0
    %p50 = por %p48, %p49
    %p51 = scmp.ne.s32.totalorder %s37, %s38
    %p52 = scmp.eq.s32.totalorder %s18, 3
    %p53 = por %p51, %p52
    %p55 = scmp.ne.s32.totalorder %s38, %s54
    %p56 = scmp.eq.s32.totalorder %s18, 0
    %p57 = por %p55, %p56
    %s59 = sadd.s32 %s58, 1
    %p62 = scmp.eq.s32.totalorder %s12, 3
    %p63 = scmp.ne.s32.totalorder %s58, %s60
    %p64 = scmp.eq.s32.totalorder %s12, 0
    %p65 = por %p63, %p64
    %p66 = scmp.ne.s32.totalorder %s58, %s60
    %p67 = scmp.eq.s32.totalorder %s17, 3
    %p68 = por %p66, %p67
    %p69 = scmp.ne.s32.totalorder %s60, %s61
    %p70 = scmp.eq.s32.totalorder %s17, 0
    %p71 = por %p69, %p70
    %p72 = scmp.ne.s32.totalorder %s60, %s61
    %p73 = scmp.eq.s32.totalorder %s18, 3
    %p74 = por %p72, %p73
    %p76 = scmp.ne.s32.totalorder %s61, %s75
    %p77 = scmp.eq.s32.totalorder %s18, 0
    %p78 = por %p76, %p77
    %s80 = sadd.s32 %s79, 1
    %p83 = scmp.eq.s32.totalorder %s12, 3
    %p84 = scmp.ne.s32.totalorder %s79, %s81
    %p85 = scmp.eq.s32.totalorder %s12, 0
    %p86 = por %p84, %p85
    %p87 = scmp.ne.s32.totalorder %s79, %s81
    %p88 = scmp.eq.s32.totalorder %s17, 3
    %p89 = por %p87, %p88
    %p90 = scmp.ne.s32.totalorder %s81, %s82
    %p91 = scmp.eq.s32.totalorder %s17, 0
    %p92 = por %p90, %p91
    %p93 = scmp.ne.s32.totalorder %s81, %s82
    %p94 = scmp.eq.s32.totalorder %s18, 3
    %p95 = por %p93, %p94
    %p97 = scmp.ne.s32.totalorder %s82, %s96
    %p98 = scmp.eq.s32.totalorder %s18, 0
    %p99 = por %p97, %p98
    %s101 = sadd.s32 %s100, 1
    %p104 = scmp.eq.s32.totalorder %s12, 3
    %p105 = scmp.ne.s32.totalorder %s100, %s102
    %p106 = scmp.eq.s32.totalorder %s12, 0
    %p107 = por %p105, %p106
    %p108 = scmp.ne.s32.totalorder %s100, %s102
    %p109 = scmp.eq.s32.totalorder %s17, 3
    %p110 = por %p108, %p109
    %p111 = scmp.ne.s32.totalorder %s102, %s103
    %p112 = scmp.eq.s32.totalorder %s17, 0
    %p113 = por %p111, %p112
    %p114 = scmp.ne.s32.totalorder %s102, %s103
    %p115 = scmp.eq.s32.totalorder %s18, 3
    %p116 = por %p114, %p115
    %p118 = scmp.ne.s32.totalorder %s103, %s117
    %p119 = scmp.eq.s32.totalorder %s18, 0
    %p120 = por %p118, %p119
    %s121 = ssub.s32 %s19, %s31
    %s122 = ssub.s32 %s20, %s27
    %s123 = sor.u32 %s121, %s122
    %p124 = scmp.eq.s32.totalorder %s123, 0
    %s126 = sadd.s32 %s125, 1
    %s127 = scalar_select %p124, %s125, %s126
    %p130 = pneg %p124
    %p131 = scmp.eq.s32.totalorder %s12, 3
    %p132 = por %p130, %p131
    %p133 = scmp.ne.s32.totalorder %s125, %s128
    %p134 = scmp.eq.s32.totalorder %s12, 0
    %p135 = por %p133, %p134
    %p136 = scmp.ne.s32.totalorder %s125, %s128
    %p137 = scmp.eq.s32.totalorder %s17, 3
    %p138 = por %p136, %p137
    %p139 = scmp.ne.s32.totalorder %s128, %s129
    %p140 = scmp.eq.s32.totalorder %s17, 0
    %p141 = por %p139, %p140
    %p142 = scmp.ne.s32.totalorder %s128, %s129
    %p143 = scmp.eq.s32.totalorder %s18, 3
    %p144 = por %p142, %p143
    %p146 = scmp.ne.s32.totalorder %s129, %s145
    %p147 = scmp.eq.s32.totalorder %s18, 0
    %p148 = por %p146, %p147
    %s149 = ssub.s32 %s19, %s31
    %s150 = ssub.s32 %s20, %s27
    %s151 = sor.u32 %s149, %s150
    %p152 = scmp.eq.s32.totalorder %s151, 0
    %s154 = sadd.s32 %s153, 1
    %s155 = scalar_select %p152, %s153, %s154
    %p158 = pneg %p152
    %p159 = scmp.eq.s32.totalorder %s12, 3
    %p160 = por %p158, %p159
    %p161 = scmp.ne.s32.totalorder %s153, %s156
    %p162 = scmp.eq.s32.totalorder %s12, 0
    %p163 = por %p161, %p162
    %p164 = scmp.ne.s32.totalorder %s153, %s156
    %p165 = scmp.eq.s32.totalorder %s17, 3
    %p166 = por %p164, %p165
    %p167 = scmp.ne.s32.totalorder %s156, %s157
    %p168 = scmp.eq.s32.totalorder %s17, 0
    %p169 = por %p167, %p168
    %p170 = scmp.ne.s32.totalorder %s156, %s157
    %p171 = scmp.eq.s32.totalorder %s18, 3
    %p172 = por %p170, %p171
    %p174 = scmp.ne.s32.totalorder %s157, %s173
    %p175 = scmp.eq.s32.totalorder %s18, 0
    %p176 = por %p174, %p175
    %p177 = scmp.le.s32.totalorder 1, %s12
    %p178 = scmp.lt.s32.totalorder %s12, 5
    %p179 = pnand %p177, %p178
    %p180 = pneg %p179
    // Predicated region
    $region9: #{_inception_forward_impl.2} parent=5 // pred_check
      _
    $region10: #{_inception_forward_impl.2} parent=5 // pred_check_branch
      %182 = sbr.rel (%p179) target = $region12
    $region11: #{_inception_forward_impl.2} parent=5 // pred_region
      %s183 = ssub.s32 %s12, 1
      // Predicated region
      $region13: #{_inception_forward_impl.2} parent=11 // pred_check
        %p184 = pneg %p71
      $region14: #{_inception_forward_impl.2} parent=11 // pred_check_branch
        %186 = sbr.rel (%p184) target = $region16
      $region15: #{_inception_forward_impl.2} parent=11 // pred_region
        _
      $region16: #{_inception_forward_impl.2} parent=11 // pred_fallthru
        _
      // Predicated region
      $region17: #{_inception_forward_impl.2} parent=11 // pred_check
        %p187 = pneg %p92
      $region18: #{_inception_forward_impl.2} parent=11 // pred_check_branch
        %189 = sbr.rel (%p187) target = $region20
      $region19: #{_inception_forward_impl.2} parent=11 // pred_region
        _
      $region20: #{_inception_forward_impl.2} parent=11 // pred_fallthru
        _
      // Predicated region
      $region21: #{_inception_forward_impl.2} parent=11 // pred_check
        %p190 = pneg %p113
      $region22: #{_inception_forward_impl.2} parent=11 // pred_check_branch
        %192 = sbr.rel (%p190) target = $region24
      $region23: #{_inception_forward_impl.2} parent=11 // pred_region
        _
      $region24: #{_inception_forward_impl.2} parent=11 // pred_fallthru
        _
    $region12: #{_inception_forward_impl.2} parent=5 // pred_fallthru
      _
    %p193 = scmp.lt.s32.totalorder %s12, 4
    // Predicated region
    $region25: #{_inception_forward_impl.2} parent=5 // pred_check
      %p194 = pneg %p193
    $region26: #{_inception_forward_impl.2} parent=5 // pred_check_branch
      %196 = sbr.rel (%p194) target = $region28
    $region27: #{_inception_forward_impl.2} parent=5 // pred_region
      // Predicated region
      $region29: #{_inception_forward_impl.2} parent=27 // pred_check
        %p197 = pneg %p44
      $region30: #{_inception_forward_impl.2} parent=27 // pred_check_branch
        %199 = sbr.rel (%p197) target = $region32
      $region31: #{_inception_forward_impl.2} parent=27 // pred_region
        %p200 = scmp.lt.s32.totalorder %s19, 1
        %s201 = scalar_select %p200, %s19, 1
        %s202 = smul.addr %s201, 5
        %s203 = smul.addr %s202, 4
        %s204 = scalar_lea.vmem %s0, %s203
      $region32: #{_inception_forward_impl.2} parent=27 // pred_fallthru
        _
    $region28: #{_inception_forward_impl.2} parent=5 // pred_fallthru
      _
    %p205 = scmp.le.s32.totalorder 1, %s12
    %p206 = scmp.lt.s32.totalorder %s12, 5
    %p207 = pnand %p205, %p206
    %p208 = pneg %p207
    // Predicated region
    $region33: #{_inception_forward_impl.2} parent=5 // pred_check
      _
    $region34: #{_inception_forward_impl.2} parent=5 // pred_check_branch
      %210 = sbr.rel (%p207) target = $region36
    $region35: #{_inception_forward_impl.2} parent=5 // pred_region
      %s211 = ssub.s32 %s12, 1
      %p212 = scmp.lt.s32.totalorder %s21, 1
      %s213 = scalar_select %p212, %s21, 1
      %s214 = smul.addr %s213, 5
      %s215 = smul.addr %s214, 4
      %s216 = scalar_lea.vmem %s0, %s215
      %p217 = pneg %p50
      %p218 = pneg %p47
      %p219 = pneg %p71
      %p220 = pneg %p68
      %p221 = pneg %p92
      %p222 = pneg %p89
      %p223 = pneg %p113
      %p224 = pneg %p110
      %p225 = pneg %p141
      %p226 = pneg %p138
      %s227 = smul.u32 2, %s22
      %p228 = scmp.lt.s32.totalorder %s21, 1
      %s229 = scalar_select %p228, %s21, 1
      %p230 = scmp.lt.s32.totalorder %s227, 3
      %s231 = scalar_select %p230, %s227, 3
      %s232 = smul.addr %s229, 4
      %s233 = sadd.s32 %s231, %s232
      %s234 = smul.addr %s233, 4
      %s235 = scalar_lea.vmem %s4, %s234
      %p236 = pneg %p169
      %p237 = pneg %p166
      %p238 = scmp.lt.s32.totalorder %s21, 1
      %s239 = scalar_select %p238, %s21, 1
      %p240 = scmp.lt.s32.totalorder %s22, 1
      %s241 = scalar_select %p240, %s22, 1
      %s242 = smul.addr %s239, 2
      %s243 = sadd.s32 %s241, %s242
      %s244 = smul.addr %s243, 8
      %s245 = scalar_lea.vmem %s5, %s244
      %p246 = scmp.lt.s32.totalorder %s21, 1
      %s247 = scalar_select %p246, %s21, 1
      %s248 = smul.addr %s247, 5
      %s249 = smul.addr %s248, 4
      %s250 = scalar_lea.vmem %s0, %s249
      %s251 = smul.u32 2, %s22
      %p252 = scmp.lt.s32.totalorder %s21, 1
      %s253 = scalar_select %p252, %s21, 1
      %p254 = scmp.lt.s32.totalorder %s251, 3
      %s255 = scalar_select %p254, %s251, 3
      %s256 = smul.addr %s253, 4
      %s257 = sadd.s32 %s255, %s256
      %s258 = smul.addr %s257, 4
      %s259 = scalar_lea.vmem %s4, %s258
      %s260 = smul.u32 2, %s22
      %p261 = scmp.lt.s32.totalorder %s21, 1
      %s262 = scalar_select %p261, %s21, 1
      %p263 = scmp.lt.s32.totalorder %s22, 1
      %s264 = scalar_select %p263, %s22, 1
      %s265 = smul.addr %s262, 2
      %s266 = sadd.s32 %s264, %s265
      %s267 = smul.addr %s266, 8
      %s268 = scalar_lea.vmem %s5, %s267
      %s270 = smul.u32 %s22, 256
      %s271 = sshra.s32 %s270, 7
      %s272 = sand.u32 %s270, 127
      %s273 = smul.addr %s271, 4
      %s274 = scalar_lea.vmem %s250, %s273
      %v275 = vld [vmem:[%s274] sm:$0xff]
      %v276 = vld [vmem:[%s274 + $0x8] sm:$0xf]
      %s277 = ssub.s32 %s270, 3
      %v278 = vlaneseq
      %v279 = vand.u32 %v278, 127
      %v280 = vadd.s32 %v279, 128
      %v281 = vadd.s32 %v279, 256
      %v282 = vstv %s277
      %v283 = vadd.s32 %v282, %v279
      %v284 = vadd.s32 %v282, %v280
      %v285 = vadd.s32 %v282, %v281
      %vm286 = vcmp.ge.s32.totalorder %v283, 0
      %vm287 = vcmp.ge.s32.totalorder %v284, 0
      %vm288 = vcmp.ge.s32.totalorder %v285, 0
      %vm289 = vcmp.lt.s32.totalorder %v283, 300
      %vm290 = vcmp.lt.s32.totalorder %v284, 300
      %vm291 = vcmp.lt.s32.totalorder %v285, 300
      %vm292 = vmand %vm286, %vm289
      %vm293 = vmand %vm287, %vm290
      %vm294 = vmand %vm288, %vm291
      %v295 = vld [vmem:[%s1] sm:$0xf]
      %v296 = vld [vmem:[%s2] sm:$0xf]
      %298 = vset.pattern.permute.xlu0 0
      %299 = vperm.xlu0 %298, %v296
      %v300 = vpop.permute.xlu0 %299
      %v304 = vcombine.high %v275, %v275
      %305 = vrot.lane.b32.xlu0 %v275, 127
      %v306 = vpop.permute.xlu0 %305
      %307 = vrot.lane.b32.xlu0 %v304, 127
      %v308 = vpop.permute.xlu0 %307
      %309 = vrot.lane.b32.xlu0 %v276, 127
      %v310 = vpop.permute.xlu0 %309
      %vm311 = vcmask 1039360
      %v312 = vsel %vm311, %v306, %v308
      %v313 = vsel %vm311, %v308, %v310
      %vm314 = vcmask 31744
      %v316 = vsel %vm314, %v295, 0
      %vm318 = vcmask 1043456
      %v319 = vsel %vm318, %v312, 0
      %v321 = vsel %vm318, %v313, 0
      %v323 = vsel %vm318, %v310, 0
      %325 = vmatprep.subr.mxu0 %v321
      %326 = vmatpush1.msra.mxu0 %v319
      %327 = vmatprep.subr.mxu0 0.0
      %328 = vmatpush1.msra.mxu0 0.0
      %329 = vmatprep.subr.mxu0 0.0
      %330 = vmatpush1.msra.mxu0 0.0
      %331 = vmatprep.subr.mxu0 0.0
      %332 = vmatpush1.msra.mxu0 0.0
      %333 = vmatprep.subr.mxu0 0.0
      %334 = vmatpush1.msra.mxu0 0.0
      %335 = vmatprep.subr.mxu0 0.0
      %336 = vmatpush1.msra.mxu0 0.0
      %337 = vmatprep.subr.mxu0 0.0
      %338 = vmatpush1.msra.mxu0 0.0
      %339 = vmatprep.subr.mxu0 0.0
      %340 = vmatpush1.msra.mxu0 0.0
      %341 = vmatprep.subr.mxu0 0.0
      %342 = vmatpush1.msra.mxu0 0.0
      %343 = vmatprep.subr.mxu0 0.0
      %344 = vmatpush1.msra.mxu0 0.0
      %345 = vmatprep.subr.mxu0 0.0
      %346 = vmatpush1.msra.mxu0 0.0
      %347 = vmatprep.subr.mxu0 0.0
      %348 = vmatpush1.msra.mxu0 0.0
      %349 = vmatprep.subr.mxu0 0.0
      %350 = vmatpush1.msra.mxu0 0.0
      %351 = vmatprep.subr.mxu0 0.0
      %352 = vmatpush1.msra.mxu0 0.0
      %353 = vmatprep.subr.mxu0 0.0
      %354 = vmatpush1.msra.mxu0 0.0
      %355 = vmatprep.subr.mxu0 0.0
      %356 = vmatpush1.msra.mxu0 0.0
      %357 = vmatprep.subr.mxu0 0.0
      %358 = vmatpush1.msra.mxu0 0.0
      %359 = vmatprep.subr.mxu0 0.0
      %360 = vmatpush1.msra.mxu0 0.0
      %361 = vmatprep.subr.mxu0 0.0
      %362 = vmatpush1.msra.mxu0 0.0
      %363 = vmatprep.subr.mxu0 0.0
      %364 = vmatpush1.msra.mxu0 0.0
      %365 = vmatprep.subr.mxu0 0.0
      %366 = vmatpush1.msra.mxu0 0.0
      %367 = vmatprep.subr.mxu0 0.0
      %368 = vmatpush1.msra.mxu0 0.0
      %369 = vmatprep.subr.mxu0 0.0
      %370 = vmatpush1.msra.mxu0 0.0
      %371 = vmatprep.subr.mxu0 0.0
      %372 = vmatpush1.msra.mxu0 0.0
      %373 = vmatprep.subr.mxu0 0.0
      %374 = vmatpush1.msra.mxu0 0.0
      %375 = vmatprep.subr.mxu0 0.0
      %376 = vmatpush1.msra.mxu0 0.0
      %377 = vmatprep.subr.mxu0 0.0
      %378 = vmatpush1.msra.mxu0 0.0
      %379 = vmatprep.subr.mxu0 0.0
      %380 = vmatpush1.msra.mxu0 0.0
      %381 = vmatprep.subr.mxu0 0.0
      %382 = vmatpush1.msra.mxu0 0.0
      %383 = vmatprep.subr.mxu0 0.0
      %384 = vmatpush1.msra.mxu0 0.0
      %385 = vmatprep.subr.mxu0 0.0
      %386 = vmatpush1.msra.mxu0 0.0
      %387 = vmatprep.subr.mxu0 0.0
      %388 = vmatpush1.msra.mxu0 0.0
      %389 = vmatprep.mubr.f32.mxu0 0.0
      %390 = vmatmul.mubr.f32.gmra.mrb[0].mxu0 %v316
      %v391 = vpop.f32.mrb[0].mxu0
      %v392 = vadd.f32 %v300, %v391
      %v393 = vpop.f32.mrb[0].mxu0
      %v394 = vadd.f32 %v300, %v393
      %395 = vdwg.mxu0
      %396 = vmatprep.subr.mxu0 0.0
      %397 = vmatpush1.msra.mxu0 %v323
      %398 = vmatprep.subr.mxu0 0.0
      %399 = vmatpush1.msra.mxu0 0.0
      %400 = vmatprep.subr.mxu0 0.0
      %401 = vmatpush1.msra.mxu0 0.0
      %402 = vmatprep.subr.mxu0 0.0
      %403 = vmatpush1.msra.mxu0 0.0
      %404 = vmatprep.subr.mxu0 0.0
      %405 = vmatpush1.msra.mxu0 0.0
      %406 = vmatprep.subr.mxu0 0.0
      %407 = vmatpush1.msra.mxu0 0.0
      %408 = vmatprep.subr.mxu0 0.0
      %409 = vmatpush1.msra.mxu0 0.0
      %410 = vmatprep.subr.mxu0 0.0
      %411 = vmatpush1.msra.mxu0 0.0
      %412 = vmatprep.subr.mxu0 0.0
      %413 = vmatpush1.msra.mxu0 0.0
      %414 = vmatprep.subr.mxu0 0.0
      %415 = vmatpush1.msra.mxu0 0.0
      %416 = vmatprep.subr.mxu0 0.0
      %417 = vmatpush1.msra.mxu0 0.0
      %418 = vmatprep.subr.mxu0 0.0
      %419 = vmatpush1.msra.mxu0 0.0
      %420 = vmatprep.subr.mxu0 0.0
      %421 = vmatpush1.msra.mxu0 0.0
      %422 = vmatprep.subr.mxu0 0.0
      %423 = vmatpush1.msra.mxu0 0.0
      %424 = vmatprep.subr.mxu0 0.0
      %425 = vmatpush1.msra.mxu0 0.0
      %426 = vmatprep.subr.mxu0 0.0
      %427 = vmatpush1.msra.mxu0 0.0
      %428 = vmatprep.subr.mxu0 0.0
      %429 = vmatpush1.msra.mxu0 0.0
      %430 = vmatprep.subr.mxu0 0.0
      %431 = vmatpush1.msra.mxu0 0.0
      %432 = vmatprep.subr.mxu0 0.0
      %433 = vmatpush1.msra.mxu0 0.0
      %434 = vmatprep.subr.mxu0 0.0
      %435 = vmatpush1.msra.mxu0 0.0
      %436 = vmatprep.subr.mxu0 0.0
      %437 = vmatpush1.msra.mxu0 0.0
      %438 = vmatprep.subr.mxu0 0.0
      %439 = vmatpush1.msra.mxu0 0.0
      %440 = vmatprep.subr.mxu0 0.0
      %441 = vmatpush1.msra.mxu0 0.0
      %442 = vmatprep.subr.mxu0 0.0
      %443 = vmatpush1.msra.mxu0 0.0
      %444 = vmatprep.subr.mxu0 0.0
      %445 = vmatpush1.msra.mxu0 0.0
      %446 = vmatprep.subr.mxu0 0.0
      %447 = vmatpush1.msra.mxu0 0.0
      %448 = vmatprep.subr.mxu0 0.0
      %449 = vmatpush1.msra.mxu0 0.0
      %450 = vmatprep.subr.mxu0 0.0
      %451 = vmatpush1.msra.mxu0 0.0
      %452 = vmatprep.subr.mxu0 0.0
      %453 = vmatpush1.msra.mxu0 0.0
      %454 = vmatprep.subr.mxu0 0.0
      %455 = vmatpush1.msra.mxu0 0.0
      %456 = vmatprep.subr.mxu0 0.0
      %457 = vmatpush1.msra.mxu0 0.0
      %458 = vmatprep.subr.mxu0 0.0
      %459 = vmatpush1.msra.mxu0 0.0
      %460 = vmatprep.mubr.f32.mxu0 0.0
      %461 = vmatmul.mubr.f32.gmra.mrb[0].mxu0 %v316
      %v462 = vpop.f32.mrb[0].mxu0
      %v463 = vadd.f32 %v300, %v462
      %v464 = vpop.f32.mrb[0].mxu0
      %465 = vdwg.mxu0
      %v466 = vsel %vm292, 1, 0
      %v467 = vsel %vm293, 1, 0
      %v468 = vsel %vm294, 1, 0
      %vm469 = vcmp.eq.s32.totalorder %v466, 1
      %vm470 = vcmp.eq.s32.totalorder %v467, 1
      %vm471 = vcmp.eq.s32.totalorder %v468, 1
      %v472 = vsel %vm469, %v392, 0.0
      %v473 = vsel %vm470, %v394, 0.0
      %v474 = vsel %vm471, %v463, 0.0
      %v478 = vsel %vm469, %v312, -1e+30
      %v479 = vsel %vm470, %v313, -1e+30
      %v480 = vsel %vm471, %v310, -1e+30
      %vm481 = vcmp.ge.s32.totalorder %v283, 1
      %vm482 = vcmp.ge.s32.totalorder %v284, 1
      %vm483 = vcmp.ge.s32.totalorder %v285, 1
      %vm484 = vcmp.le.s32.totalorder %v283, 300
      %vm485 = vcmp.le.s32.totalorder %v284, 300
      %vm486 = vcmp.le.s32.totalorder %v285, 300
      %vm487 = vmand %vm481, %vm484
      %vm488 = vmand %vm482, %vm485
      %vm489 = vmand %vm483, %vm486
      %v490 = vsel %vm487, 1, 0
      %v491 = vsel %vm488, 1, 0
      %v492 = vsel %vm489, 1, 0
      %vm493 = vcmp.eq.s32.totalorder %v490, 1
      %vm494 = vcmp.eq.s32.totalorder %v491, 1
      %vm495 = vcmp.eq.s32.totalorder %v492, 1
      %v497 = vsel %vm493, %v275, -1e+30
      %v498 = vsel %vm494, %v304, -1e+30
      %v499 = vsel %vm495, %v276, -1e+30
      %v500 = vmax.f32 %v478, %v497
      %v501 = vmax.f32 %v479, %v498
      %v502 = vmax.f32 %v480, %v499
      %vm503 = vcmp.ge.s32.totalorder %v283, 4294967295
      %vm504 = vcmp.ge.s32.totalorder %v284, 4294967295
      %vm505 = vcmp.ge.s32.totalorder %v285, 4294967295
      %vm506 = vcmp.lt.s32.totalorder %v283, 299
      %vm507 = vcmp.lt.s32.totalorder %v284, 299
      %vm508 = vcmp.lt.s32.totalorder %v285, 299
      %vm509 = vmand %vm503, %vm506
      %vm510 = vmand %vm504, %vm507
      %vm511 = vmand %vm505, %vm508
      %v512 = vsel %vm509, 1, 0
      %v513 = vsel %vm510, 1, 0
      %v514 = vsel %vm511, 1, 0
      %vm515 = vcmp.eq.s32.totalorder %v512, 1
      %vm516 = vcmp.eq.s32.totalorder %v513, 1
      %vm517 = vcmp.eq.s32.totalorder %v514, 1
      %518 = vrot.lane.b32.xlu0 %v275, 126
      %v519 = vpop.permute.xlu0 %518
      %520 = vrot.lane.b32.xlu0 %v304, 126
      %v521 = vpop.permute.xlu0 %520
      %522 = vrot.lane.b32.xlu0 %v276, 126
      %v523 = vpop.permute.xlu0 %522
      %vm524 = vcmask 1031168
      %v525 = vsel %vm524, %v519, %v521
      %v526 = vsel %vm524, %v521, %v523
      %v530 = vsel %vm515, %v525, -1e+30
      %v531 = vsel %vm516, %v526, -1e+30
      %v532 = vsel %vm517, %v523, -1e+30
      %v533 = vmax.f32 %v500, %v530
      %v534 = vmax.f32 %v501, %v531
      %v535 = vmax.f32 %v502, %v532
      %v536 = vsel %vm469, %v533, 0.0
      %v537 = vsel %vm470, %v534, 0.0
      %v538 = vsel %vm471, %v535, 0.0
      %539 = vst [vmem:[#allocation2] sm:$0xf] %v472
      %540 = vst [vmem:[#allocation2 + $0x8] sm:$0xf] %v473
      %v544 = vrot.slane %v472, 4
      %v545 = vrot.slane %v473, 4
      %v546 = vrot.slane %v474, 4
      %547 = vrot.lane.b32.xlu0 %v544, 127
      %v548 = vpop.permute.xlu0 %547
      %549 = vrot.lane.b32.xlu0 %v545, 127
      %v550 = vpop.permute.xlu0 %549
      %551 = vrot.lane.b32.xlu0 %v546, 127
      %v552 = vpop.permute.xlu0 %551
      %v553 = vsel %vm311, %v548, %v550
      %v554 = vsel %vm311, %v550, %v552
      %557 = vst [vmem:[#allocation2] sm:$0xf0] %v553
      %558 = vst [vmem:[#allocation2 + $0x8] sm:$0xf0] %v554
      %559 = vrot.lane.b32.xlu0 %v472, 126
      %v560 = vpop.permute.xlu0 %559
      %561 = vrot.lane.b32.xlu0 %v473, 126
      %v562 = vpop.permute.xlu0 %561
      %563 = vrot.lane.b32.xlu0 %v474, 126
      %v564 = vpop.permute.xlu0 %563
      %v565 = vsel %vm524, %v560, %v562
      %v566 = vsel %vm524, %v562, %v564
      %569 = vst [vmem:[#allocation2 + $0x10] sm:$0xf] %v565
      %570 = vst [vmem:[#allocation2 + $0x18] sm:$0xf] %v566
      %571 = vrot.lane.b32.xlu0 %v544, 125
      %v572 = vpop.permute.xlu0 %571
      %573 = vrot.lane.b32.xlu0 %v545, 125
      %v574 = vpop.permute.xlu0 %573
      %575 = vrot.lane.b32.xlu0 %v546, 125
      %v576 = vpop.permute.xlu0 %575
      %vm577 = vcmask 1022976
      %v578 = vsel %vm577, %v572, %v574
      %v579 = vsel %vm577, %v574, %v576
      %582 = vst [vmem:[#allocation2 + $0x10] sm:$0xf0] %v578
      %583 = vst [vmem:[#allocation2 + $0x18] sm:$0xf0] %v579
      %584 = vrot.lane.b32.xlu0 %v472, 124
      %v585 = vpop.permute.xlu0 %584
      %586 = vrot.lane.b32.xlu0 %v473, 124
      %v587 = vpop.permute.xlu0 %586
      %588 = vrot.lane.b32.xlu0 %v474, 124
      %v589 = vpop.permute.xlu0 %588
      %vm590 = vcmask 1014784
      %v591 = vsel %vm590, %v585, %v587
      %v592 = vsel %vm590, %v587, %v589
      %595 = vst [vmem:[#allocation2 + $0x20] sm:$0xf] %v591
      %596 = vst [vmem:[#allocation2 + $0x28] sm:$0xf] %v592
      %597 = vrot.lane.b32.xlu0 %v544, 123
      %v598 = vpop.permute.xlu0 %597
      %599 = vrot.lane.b32.xlu0 %v545, 123
      %v600 = vpop.permute.xlu0 %599
      %601 = vrot.lane.b32.xlu0 %v546, 123
      %v602 = vpop.permute.xlu0 %601
      %vm603 = vcmask 1006592
      %v604 = vsel %vm603, %v598, %v600
      %v605 = vsel %vm603, %v600, %v602
      %608 = vst [vmem:[#allocation2 + $0x20] sm:$0xf0] %v604
      %609 = vst [vmem:[#allocation2 + $0x28] sm:$0xf0] %v605
      %610 = vrot.lane.b32.xlu0 %v472, 122
      %v611 = vpop.permute.xlu0 %610
      %612 = vrot.lane.b32.xlu0 %v473, 122
      %v613 = vpop.permute.xlu0 %612
      %614 = vrot.lane.b32.xlu0 %v474, 122
      %v615 = vpop.permute.xlu0 %614
      %vm616 = vcmask 998400
      %v617 = vsel %vm616, %v611, %v613
      %v618 = vsel %vm616, %v613, %v615
      %621 = vst [vmem:[#allocation2 + $0x30] sm:$0xf] %v617
      %622 = vst [vmem:[#allocation2 + $0x38] sm:$0xf] %v618
      %v626 = vrot.slane %v536, 4
      %v627 = vrot.slane %v537, 4
      %v628 = vrot.slane %v538, 4
      %629 = vrot.lane.b32.xlu0 %v626, 126
      %v630 = vpop.permute.xlu0 %629
      %631 = vrot.lane.b32.xlu0 %v627, 126
      %v632 = vpop.permute.xlu0 %631
      %633 = vrot.lane.b32.xlu0 %v628, 126
      %v634 = vpop.permute.xlu0 %633
      %v635 = vsel %vm524, %v630, %v632
      %v636 = vsel %vm524, %v632, %v634
      %639 = vst [vmem:[#allocation2 + $0x30] sm:$0xf0] %v635
      %640 = vst [vmem:[#allocation2 + $0x38] sm:$0xf0] %v636
      %641 = vrot.lane.b32.xlu0 %v536, 125
      %v642 = vpop.permute.xlu0 %641
      %643 = vrot.lane.b32.xlu0 %v537, 125
      %v644 = vpop.permute.xlu0 %643
      %645 = vrot.lane.b32.xlu0 %v538, 125
      %v646 = vpop.permute.xlu0 %645
      %v647 = vsel %vm577, %v642, %v644
      %v648 = vsel %vm577, %v644, %v646
      %651 = vst [vmem:[#allocation2 + $0x40] sm:$0xf] %v647
      %652 = vst [vmem:[#allocation2 + $0x48] sm:$0xf] %v648
      %653 = vrot.lane.b32.xlu0 %v626, 124
      %v654 = vpop.permute.xlu0 %653
      %655 = vrot.lane.b32.xlu0 %v627, 124
      %v656 = vpop.permute.xlu0 %655
      %657 = vrot.lane.b32.xlu0 %v628, 124
      %v658 = vpop.permute.xlu0 %657
      %v659 = vsel %vm590, %v654, %v656
      %v660 = vsel %vm590, %v656, %v658
      %663 = vst [vmem:[#allocation2 + $0x40] sm:$0xf0] %v659
      %664 = vst [vmem:[#allocation2 + $0x48] sm:$0xf0] %v660
      %665 = vrot.lane.b32.xlu0 %v536, 123
      %v666 = vpop.permute.xlu0 %665
      %667 = vrot.lane.b32.xlu0 %v537, 123
      %v668 = vpop.permute.xlu0 %667
      %669 = vrot.lane.b32.xlu0 %v538, 123
      %v670 = vpop.permute.xlu0 %669
      %v671 = vsel %vm603, %v666, %v668
      %v672 = vsel %vm603, %v668, %v670
      %675 = vst [vmem:[#allocation2 + $0x50] sm:$0xf] %v671
      %676 = vst [vmem:[#allocation2 + $0x58] sm:$0xf] %v672
      %v677 = vld [vmem:[%s3] sm:$0xf]
      %v678 = vld [vmem:[#allocation2] sm:$0xff]
      %v679 = vld [vmem:[#allocation2 + $0x8] sm:$0xff]
      %v680 = vld [vmem:[#allocation2 + $0x10] sm:$0xff]
      %v681 = vld [vmem:[#allocation2 + $0x18] sm:$0xff]
      %v682 = vld [vmem:[#allocation2 + $0x20] sm:$0xff]
      %v683 = vld [vmem:[#allocation2 + $0x28] sm:$0xff]
      %v684 = vld [vmem:[#allocation2 + $0x30] sm:$0xff]
      %v685 = vld [vmem:[#allocation2 + $0x38] sm:$0xff]
      %v686 = vld [vmem:[#allocation2 + $0x40] sm:$0xff]
      %v687 = vld [vmem:[#allocation2 + $0x48] sm:$0xff]
      %v688 = vld [vmem:[#allocation2 + $0x50] sm:$0xf]
      %v689 = vld [vmem:[#allocation2 + $0x58] sm:$0xf]
      %v690 = vpack.c.bf16 %v680, %v678
      %v691 = vpack.c.bf16 %v681, %v679
      %v692 = vpack.c.bf16 %v684, %v682
      %v693 = vpack.c.bf16 %v685, %v683
      %v694 = vpack.c.bf16 %v688, %v686
      %v695 = vpack.c.bf16 %v689, %v687
      %vm696 = vcmask 359424
      %v698 = vsel %vm696, %v677, 0
      %vm700 = vcmask 1045504
      %v702 = vsel %vm700, %v694, 0
      %v705 = vsel %vm700, %v695, 0
      %707 = vmatprep.subr.bf16.mxu0 %v691
      %708 = vmatpush1.bf16.msra.mxu0 %v690
      %709 = vmatprep.subr.bf16.mxu0 %v693
      %710 = vmatpush1.bf16.msra.mxu0 %v692
      %711 = vmatprep.subr.bf16.mxu0 %v705
      %712 = vmatpush1.bf16.msra.mxu0 %v702
      %713 = vmatprep.subr.bf16.mxu0 0
      %714 = vmatpush1.bf16.msra.mxu0 0
      %715 = vmatprep.subr.bf16.mxu0 0
      %716 = vmatpush1.bf16.msra.mxu0 0
      %717 = vmatprep.subr.bf16.mxu0 0
      %718 = vmatpush1.bf16.msra.mxu0 0
      %719 = vmatprep.subr.bf16.mxu0 0
      %720 = vmatpush1.bf16.msra.mxu0 0
      %721 = vmatprep.subr.bf16.mxu0 0
      %722 = vmatpush1.bf16.msra.mxu0 0
      %723 = vmatprep.subr.bf16.mxu0 0
      %724 = vmatpush1.bf16.msra.mxu0 0
      %725 = vmatprep.subr.bf16.mxu0 0
      %726 = vmatpush1.bf16.msra.mxu0 0
      %727 = vmatprep.subr.bf16.mxu0 0
      %728 = vmatpush1.bf16.msra.mxu0 0
      %729 = vmatprep.subr.bf16.mxu0 0
      %730 = vmatpush1.bf16.msra.mxu0 0
      %731 = vmatprep.subr.bf16.mxu0 0
      %732 = vmatpush1.bf16.msra.mxu0 0
      %733 = vmatprep.subr.bf16.mxu0 0
      %734 = vmatpush1.bf16.msra.mxu0 0
      %735 = vmatprep.subr.bf16.mxu0 0
      %736 = vmatpush1.bf16.msra.mxu0 0
      %737 = vmatprep.subr.bf16.mxu0 0
      %738 = vmatpush1.bf16.msra.mxu0 0
      %739 = vmatprep.mubr.bf16.mxu0 0
      %740 = vmatmul.mubr.bf16.gmra.mrb[0].mxu0 %v698
      %v741 = vpop.f32.mrb[0].mxu0
      %v742 = vadd.f32 0.0, %v741
      %v743 = vpop.f32.mrb[0].mxu0
      %v744 = vadd.f32 0.0, %v743
      %v745 = vpop.f32.mrb[0].mxu0
      %v746 = vpop.f32.mrb[0].mxu0
      %747 = vdwg.mxu0
      %v748 = vstv %s270
      %v749 = vadd.s32 %v748, %v279
      %v750 = vadd.s32 %v748, %v280
      %vm751 = vcmp.lt.s32.totalorder %v749, 300
      %vm752 = vcmp.lt.s32.totalorder %v750, 300
      %v753 = vsel %vm751, 1, 0
      %v754 = vsel %vm752, 1, 0
      %vm755 = vcmp.eq.s32.totalorder %v753, 1
      %vm756 = vcmp.eq.s32.totalorder %v754, 1
      %v757 = vsel %vm755, %v742, 0.0
      %v758 = vsel %vm756, %v744, 0.0
      %v759 = vpack.c.bf16 %v757, %v757
      %v760 = vpack.c.bf16 %v758, %v758
      %v763 = vunpack.c.l.b16 %v759
      %v764 = vunpack.c.l.b16 %v760
      %v765 = vpack.c.b16 %v764, %v763
      %767 = vst [vmem:[%s259] sm:$0xff] %v765
      %v768 = vadd.f32 %v757, %v758
      %769 = vadd.xlane.f32.xlu0 %v768
      %v770 = vpop.xlane.xlu0 %769
      %vm771 = vcmask 7168
      %772 = vst.msk [vmem:[%s268] sm:$0xff] %vm771, %v770
      %v773 = vmul.f32 %v757, %v757
      %v774 = vmul.f32 %v758, %v758
      %v775 = vadd.f32 %v773, %v774
      %776 = vadd.xlane.f32.xlu0 %v775
      %v777 = vpop.xlane.xlu0 %776
      %vm778 = vcmask 15368
      %779 = vst.msk [vmem:[%s268] sm:$0xff] %vm778, %v777
      %s780 = smul.u32 2, %s22
      %p781 = scmp.lt.s32.totalorder %s21, 1
      %s782 = scalar_select %p781, %s21, 1
      %p783 = scmp.lt.s32.totalorder %s780, 3
      %s784 = scalar_select %p783, %s780, 3
      %s785 = smul.addr %s782, 4
      %s786 = sadd.s32 %s784, %s785
      %s787 = smul.addr %s786, 4
      %s788 = scalar_lea.vmem %s4, %s787
      %p789 = scmp.lt.s32.totalorder %s21, 1
      %s790 = scalar_select %p789, %s21, 1
      %p791 = scmp.lt.s32.totalorder %s22, 1
      %s792 = scalar_select %p791, %s22, 1
      %s793 = smul.addr %s790, 2
      %s794 = sadd.s32 %s792, %s793
      %s795 = smul.addr %s794, 8
      %s796 = scalar_lea.vmem %s5, %s795
      // Predicated region
      $region37: #{_inception_forward_impl.2} parent=35 // pred_check
        %p797 = pneg %p138
      $region38: #{_inception_forward_impl.2} parent=35 // pred_check_branch
        %799 = sbr.rel (%p797) target = $region40
      $region39: #{_inception_forward_impl.2} parent=35 // pred_region
        %s800 = smul.u32 2, %s22
      $region40: #{_inception_forward_impl.2} parent=35 // pred_fallthru
        _
      // Predicated region
      $region41: #{_inception_forward_impl.2} parent=35 // pred_check
        %p801 = pneg %p166
      $region42: #{_inception_forward_impl.2} parent=35 // pred_check_branch
        %803 = sbr.rel (%p801) target = $region44
      $region43: #{_inception_forward_impl.2} parent=35 // pred_region
        _
      $region44: #{_inception_forward_impl.2} parent=35 // pred_fallthru
        _
    $region36: #{_inception_forward_impl.2} parent=5 // pred_fallthru
      _
    %p804 = scmp.le.s32.totalorder 2, %s12
    // Predicated region
    $region45: #{_inception_forward_impl.2} parent=5 // pred_check
      %p805 = pneg %p804
    $region46: #{_inception_forward_impl.2} parent=5 // pred_check_branch
      %807 = sbr.rel (%p805) target = $region48
    $region47: #{_inception_forward_impl.2} parent=5 // pred_region
      %s808 = ssub.s32 %s12, 2
      // Predicated region
      $region49: #{_inception_forward_impl.2} parent=47 // pred_check
        %p809 = pneg %p144
      $region50: #{_inception_forward_impl.2} parent=47 // pred_check_branch
        %811 = sbr.rel (%p809) target = $region52
      $region51: #{_inception_forward_impl.2} parent=47 // pred_region
        %s812 = smul.u32 2, %s24
        %p813 = scmp.lt.s32.totalorder %s23, 1
        %s814 = scalar_select %p813, %s23, 1
        %p815 = scmp.lt.s32.totalorder %s812, 3
        %s816 = scalar_select %p815, %s812, 3
        %s817 = smul.addr %s814, 4
        %s818 = sadd.s32 %s816, %s817
        %s819 = smul.addr %s818, 4
        %s820 = scalar_lea.vmem %s4, %s819
      $region52: #{_inception_forward_impl.2} parent=47 // pred_fallthru
        _
      // Predicated region
      $region53: #{_inception_forward_impl.2} parent=47 // pred_check
        %p821 = pneg %p172
      $region54: #{_inception_forward_impl.2} parent=47 // pred_check_branch
        %823 = sbr.rel (%p821) target = $region56
      $region55: #{_inception_forward_impl.2} parent=47 // pred_region
        %p824 = scmp.lt.s32.totalorder %s23, 1
        %s825 = scalar_select %p824, %s23, 1
        %p826 = scmp.lt.s32.totalorder %s24, 1
        %s827 = scalar_select %p826, %s24, 1
        %s828 = smul.addr %s825, 2
        %s829 = sadd.s32 %s827, %s828
        %s830 = smul.addr %s829, 8
        %s831 = scalar_lea.vmem %s5, %s830
      $region56: #{_inception_forward_impl.2} parent=47 // pred_fallthru
        _
    $region48: #{_inception_forward_impl.2} parent=5 // pred_fallthru
      _
  $region6: #{_inception_forward_impl.2} parent=0 // loop_footer
    %s16 = sadd.s32 1, %s12
  $region7: #{_inception_forward_impl.2} parent=0 // loop_footer_branch
    %11 = sbr.rel target = $region3
  $region8: #{_inception_forward_impl.2} parent=0 // loop_exit
    _

// kernel: _inception_forward_impl.3
$region0: #{_inception_forward_impl.3}
  #allocation0 [shape = 'u32[]', space=smem, size = 0x4, offset = 0x4, fixed_abs, tag = 'smem constant byte address 0x4 - core index']
  #allocation1 [shape = 'u32[144,128]{1,0:T(1,128)}', space=vmem, size = 0x12000, scoped, tag = 'internal scratch']
  %s0 = inlined_call_operand.vmem [shape: bf16[2,8,512], index: 0, kind: input, shape index: {}]
  %s1 = inlined_call_operand.vmem [shape: f32[1,8,1], index: 1, kind: input, shape index: {}]
  %s2 = inlined_call_operand.vmem [shape: f32[1,8,1], index: 2, kind: input, shape index: {}]
  %s3 = inlined_call_operand.vmem [shape: f32[2,8,512], index: 3, kind: output, shape index: {}]
  %s4 = sld [smem:[#allocation0]]
  $region102: #{_inception_forward_impl.3} parent=0
    _
  %s6 = ssub.s32 1, %s4
  %s7 = scalar_select 0, %s6, %s4
  $region1: #{_inception_forward_impl.3} parent=0
    #allocation2 [shape = 'u8[16384]{0}', space=vmem, size = 0x4000, scoped, tag = 'input window, operand 0']
    #allocation3 [shape = 'u8[32768]{0}', space=vmem, size = 0x8000, scoped, tag = 'output window, operand 0']
    loop: start=0, step=1, limit=4
    $region2: #{_inception_forward_impl.3} parent=1 // loop_pre_header
      _
    $region3: #{_inception_forward_impl.3} parent=1 // loop_header
      %s9 = sphi 0, %s13
      %p10 = scmp.ge.s32.totalorder %s9, 4
      %s16 = sphi 0, %s28
      %s17 = sphi 0, %s24
      %s18 = sphi 0, %s16
      %s19 = sphi 0, %s17
      %s20 = sphi 0, %s18
      %s21 = sphi 0, %s19
      %s33 = sphi 0, %s35
      %s36 = sphi 0, %s33
      %s37 = sphi 0, %s36
      %s53 = sphi 0, %s37
      %s57 = sphi 0, %s57
      %s59 = sphi 0, %s57
      %s60 = sphi 0, %s59
      %s74 = sphi 0, %s60
      %s78 = sphi 0, %s78
      %s80 = sphi 0, %s78
      %s81 = sphi 0, %s80
      %s95 = sphi 0, %s81
      %s103 = sphi 0, %s105
      %s106 = sphi 0, %s103
      %s107 = sphi 0, %s106
      %s123 = sphi 0, %s107
    $region4: #{_inception_forward_impl.3} parent=1 // loop_header_branch
      %12 = sbr.rel (%p10) target = $region8
    $region5: #{_inception_forward_impl.3} parent=1 // loop_body
      %s14 = ssub.s32 %s9, 1
      %s15 = ssub.s32 %s9, 2
      %s22 = sadd.s32 1, %s17
      %p23 = scmp.ge.s32.totalorder %s22, 2
      %s24 = scalar_select %p23, 0, %s22
      %s25 = sadd.s32 1, %s16
      %s26 = scalar_select %p23, %s25, %s16
      %p27 = scmp.ge.s32.totalorder %s26, 1
      %s28 = scalar_select %p27, 0, %s26
      %s29 = ssub.s32 %s16, %s28
      %s30 = ssub.s32 %s17, %s24
      %s31 = sor.u32 %s29, %s30
      %p32 = scmp.eq.s32.totalorder %s31, 0
      %s34 = sadd.s32 %s33, 1
      %s35 = scalar_select %p32, %s33, %s34
      %p38 = pneg %p32
      %p39 = scmp.eq.s32.totalorder %s9, 1
      %p40 = por %p38, %p39
      %p41 = scmp.ne.s32.totalorder %s33, %s36
      %p42 = scmp.eq.s32.totalorder %s9, 0
      %p43 = por %p41, %p42
      %p44 = scmp.ne.s32.totalorder %s33, %s36
      %p45 = scmp.eq.s32.totalorder %s14, 1
      %p46 = por %p44, %p45
      %p47 = scmp.ne.s32.totalorder %s36, %s37
      %p48 = scmp.eq.s32.totalorder %s14, 0
      %p49 = por %p47, %p48
      %p50 = scmp.ne.s32.totalorder %s36, %s37
      %p51 = scmp.eq.s32.totalorder %s15, 1
      %p52 = por %p50, %p51
      %p54 = scmp.ne.s32.totalorder %s37, %s53
      %p55 = scmp.eq.s32.totalorder %s15, 0
      %p56 = por %p54, %p55
      %s58 = sadd.s32 %s57, 1
      %p61 = scmp.eq.s32.totalorder %s9, 1
      %p62 = scmp.ne.s32.totalorder %s57, %s59
      %p63 = scmp.eq.s32.totalorder %s9, 0
      %p64 = por %p62, %p63
      %p65 = scmp.ne.s32.totalorder %s57, %s59
      %p66 = scmp.eq.s32.totalorder %s14, 1
      %p67 = por %p65, %p66
      %p68 = scmp.ne.s32.totalorder %s59, %s60
      %p69 = scmp.eq.s32.totalorder %s14, 0
      %p70 = por %p68, %p69
      %p71 = scmp.ne.s32.totalorder %s59, %s60
      %p72 = scmp.eq.s32.totalorder %s15, 1
      %p73 = por %p71, %p72
      %p75 = scmp.ne.s32.totalorder %s60, %s74
      %p76 = scmp.eq.s32.totalorder %s15, 0
      %p77 = por %p75, %p76
      %s79 = sadd.s32 %s78, 1
      %p82 = scmp.eq.s32.totalorder %s9, 1
      %p83 = scmp.ne.s32.totalorder %s78, %s80
      %p84 = scmp.eq.s32.totalorder %s9, 0
      %p85 = por %p83, %p84
      %p86 = scmp.ne.s32.totalorder %s78, %s80
      %p87 = scmp.eq.s32.totalorder %s14, 1
      %p88 = por %p86, %p87
      %p89 = scmp.ne.s32.totalorder %s80, %s81
      %p90 = scmp.eq.s32.totalorder %s14, 0
      %p91 = por %p89, %p90
      %p92 = scmp.ne.s32.totalorder %s80, %s81
      %p93 = scmp.eq.s32.totalorder %s15, 1
      %p94 = por %p92, %p93
      %p96 = scmp.ne.s32.totalorder %s81, %s95
      %p97 = scmp.eq.s32.totalorder %s15, 0
      %p98 = por %p96, %p97
      %s99 = ssub.s32 %s16, %s28
      %s100 = ssub.s32 %s17, %s24
      %s101 = sor.u32 %s99, %s100
      %p102 = scmp.eq.s32.totalorder %s101, 0
      %s104 = sadd.s32 %s103, 1
      %s105 = scalar_select %p102, %s103, %s104
      %p108 = pneg %p102
      %p109 = scmp.eq.s32.totalorder %s9, 1
      %p110 = por %p108, %p109
      %p111 = scmp.ne.s32.totalorder %s103, %s106
      %p112 = scmp.eq.s32.totalorder %s9, 0
      %p113 = por %p111, %p112
      %p114 = scmp.ne.s32.totalorder %s103, %s106
      %p115 = scmp.eq.s32.totalorder %s14, 1
      %p116 = por %p114, %p115
      %p117 = scmp.ne.s32.totalorder %s106, %s107
      %p118 = scmp.eq.s32.totalorder %s14, 0
      %p119 = por %p117, %p118
      %p120 = scmp.ne.s32.totalorder %s106, %s107
      %p121 = scmp.eq.s32.totalorder %s15, 1
      %p122 = por %p120, %p121
      %p124 = scmp.ne.s32.totalorder %s107, %s123
      %p125 = scmp.eq.s32.totalorder %s15, 0
      %p126 = por %p124, %p125
      %p127 = scmp.le.s32.totalorder 1, %s9
      %p128 = scmp.lt.s32.totalorder %s9, 3
      %p129 = pnand %p127, %p128
      %p130 = pneg %p129
      // Predicated region
      $region9: #{_inception_forward_impl.3} parent=5 // pred_check
        _
      $region10: #{_inception_forward_impl.3} parent=5 // pred_check_branch
        %132 = sbr.rel (%p129) target = $region12
      $region11: #{_inception_forward_impl.3} parent=5 // pred_region
        %s133 = ssub.s32 %s9, 1
        // Predicated region
        $region13: #{_inception_forward_impl.3} parent=11 // pred_check
          %p134 = pneg %p70
        $region14: #{_inception_forward_impl.3} parent=11 // pred_check_branch
          %136 = sbr.rel (%p134) target = $region16
        $region15: #{_inception_forward_impl.3} parent=11 // pred_region
          _
        $region16: #{_inception_forward_impl.3} parent=11 // pred_fallthru
          _
        // Predicated region
        $region17: #{_inception_forward_impl.3} parent=11 // pred_check
          %p137 = pneg %p91
        $region18: #{_inception_forward_impl.3} parent=11 // pred_check_branch
          %139 = sbr.rel (%p137) target = $region20
        $region19: #{_inception_forward_impl.3} parent=11 // pred_region
          _
        $region20: #{_inception_forward_impl.3} parent=11 // pred_fallthru
          _
      $region12: #{_inception_forward_impl.3} parent=5 // pred_fallthru
        _
      %p140 = scmp.lt.s32.totalorder %s9, 2
      // Predicated region
      $region21: #{_inception_forward_impl.3} parent=5 // pred_check
        %p141 = pneg %p140
      $region22: #{_inception_forward_impl.3} parent=5 // pred_check_branch
        %143 = sbr.rel (%p141) target = $region24
      $region23: #{_inception_forward_impl.3} parent=5 // pred_region
        // Predicated region
        $region25: #{_inception_forward_impl.3} parent=23 // pred_check
          %p144 = pneg %p43
        $region26: #{_inception_forward_impl.3} parent=23 // pred_check_branch
          %146 = sbr.rel (%p144) target = $region28
        $region27: #{_inception_forward_impl.3} parent=23 // pred_region
          %s147 = sand.u32 %s33, 1
          %s148 = sand.u32 %s33, 1
          %s149 = smul.addr %s148, 16
          %s150 = scalar_lea.vmem [#allocation2], %s149
          %s151 = smul.u32 2, %s16
          %s152 = smul.u32 2, %s17
          %s153 = smul.addr %s151, 4
          %s154 = sadd.s32 %s152, %s153
          %s155 = smul.addr %s154, 4
          %s156 = scalar_lea.vmem %s0, %s155
          // Predicated region
          $region29: #{_inception_forward_impl.3} parent=27 // pred_check
            _
          $region30: #{_inception_forward_impl.3} parent=27 // pred_check_branch
            %158 = sbr.rel (0) target = $region32
          $region31: #{_inception_forward_impl.3} parent=27 // pred_region
            // Predicated region
            $region33: #{_inception_forward_impl.3} parent=31 // pred_check
              _
            $region34: #{_inception_forward_impl.3} parent=31 // pred_check_branch
              %160 = sbr.rel (0) target = $region36
            $region35: #{_inception_forward_impl.3} parent=31 // pred_region
              // Predicated region
              $region48: #{_inception_forward_impl.3} parent=35 // pred_check
                _
              $region49: #{_inception_forward_impl.3} parent=35 // pred_check_branch
                %177 = sbr.rel (0) target = $region51
              $region50: #{_inception_forward_impl.3} parent=35 // pred_region
                loop: start=0, step=1, limit=1
                $region52: #{_inception_forward_impl.3} parent=50 // loop_pre_header
                  _
                $region53: #{_inception_forward_impl.3} parent=50 // loop_header
                  %s179 = sphi 0, %s183
                  %p180 = scmp.ge.s32.totalorder %s179, 1
                  %s184 = sphi %s156, %s156
                  %s185 = sphi %s150, %s150
                $region54: #{_inception_forward_impl.3} parent=50 // loop_header_branch
                  %182 = sbr.rel (%p180) target = $region58
                $region55: #{_inception_forward_impl.3} parent=50 // loop_body
                  %v186 = vld [vmem:[%s184] sm:$0xff]
                  %187 = vst [vmem:[%s185] sm:$0xff] %v186
                  %v188 = vld [vmem:[%s184 + $0x10] sm:$0xff]
                  %189 = vst [vmem:[%s185 + $0x8] sm:$0xff] %v188
                $region56: #{_inception_forward_impl.3} parent=50 // loop_footer
                  %s183 = sadd.s32 1, %s179
                $region57: #{_inception_forward_impl.3} parent=50 // loop_footer_branch
                  %178 = sbr.rel target = $region53
                $region58: #{_inception_forward_impl.3} parent=50 // loop_exit
                  _
              $region51: #{_inception_forward_impl.3} parent=35 // pred_fallthru
                _
              // Predicated region
              $region59: #{_inception_forward_impl.3} parent=35 // pred_check
                _
              $region60: #{_inception_forward_impl.3} parent=35 // pred_check_branch
                %191 = sbr.rel target = $region62
              $region61: #{_inception_forward_impl.3} parent=35 // pred_region
                _
              $region62: #{_inception_forward_impl.3} parent=35 // pred_fallthru
                _
            $region36: #{_inception_forward_impl.3} parent=31 // pred_fallthru
              _
            // Predicated region
            $region37: #{_inception_forward_impl.3} parent=31 // pred_check
              _
            $region38: #{_inception_forward_impl.3} parent=31 // pred_check_branch
              %162 = sbr.rel target = $region40
            $region39: #{_inception_forward_impl.3} parent=31 // pred_region
              loop: start=0, step=1, limit=1
              $region41: #{_inception_forward_impl.3} parent=39 // loop_pre_header
                _
              $region42: #{_inception_forward_impl.3} parent=39 // loop_header
                %s165 = sphi 0, %s169
                %p166 = scmp.ge.s32.totalorder %s165, 1
                %s170 = sphi %s156, %s156
                %s171 = sphi %s150, %s150
              $region43: #{_inception_forward_impl.3} parent=39 // loop_header_branch
                %168 = sbr.rel (%p166) target = $region47
              $region44: #{_inception_forward_impl.3} parent=39 // loop_body
                %v172 = vld [vmem:[%s170] sm:$0xff]
                %173 = vst [vmem:[%s171] sm:$0xff] %v172
                %v174 = vld [vmem:[%s170 + $0x10] sm:$0xff]
                %175 = vst [vmem:[%s171 + $0x8] sm:$0xff] %v174
              $region45: #{_inception_forward_impl.3} parent=39 // loop_footer
                %s169 = sadd.s32 1, %s165
              $region46: #{_inception_forward_impl.3} parent=39 // loop_footer_branch
                %164 = sbr.rel target = $region42
              $region47: #{_inception_forward_impl.3} parent=39 // loop_exit
                _
            $region40: #{_inception_forward_impl.3} parent=31 // pred_fallthru
              _
          $region32: #{_inception_forward_impl.3} parent=27 // pred_fallthru
            _
          %192 = vnop
        $region28: #{_inception_forward_impl.3} parent=23 // pred_fallthru
          _
      $region24: #{_inception_forward_impl.3} parent=5 // pred_fallthru
        _
      %p193 = scmp.le.s32.totalorder 1, %s9
      %p194 = scmp.lt.s32.totalorder %s9, 3
      %p195 = pnand %p193, %p194
      %p196 = pneg %p195
      // Predicated region
      $region63: #{_inception_forward_impl.3} parent=5 // pred_check
        _
      $region64: #{_inception_forward_impl.3} parent=5 // pred_check_branch
        %198 = sbr.rel (%p195) target = $region66
      $region65: #{_inception_forward_impl.3} parent=5 // pred_region
        %s199 = ssub.s32 %s9, 1
        %s200 = sand.u32 %s36, 1
        %s201 = sand.u32 %s36, 1
        %s202 = smul.addr %s201, 16
        %s203 = scalar_lea.vmem [#allocation2], %s202
        // Predicated region
        $region67: #{_inception_forward_impl.3} parent=65 // pred_check
          %p204 = pneg %p49
        $region68: #{_inception_forward_impl.3} parent=65 // pred_check_branch
          %206 = sbr.rel (%p204) target = $region70
        $region69: #{_inception_forward_impl.3} parent=65 // pred_region
          _
        $region70: #{_inception_forward_impl.3} parent=65 // pred_fallthru
          _
        %s207 = sand.u32 %s36, 1
        %s208 = sand.u32 %s36, 1
        %s209 = smul.addr %s208, 16
        %s210 = scalar_lea.vmem [#allocation2], %s209
        %p211 = pneg %p49
        %p212 = pneg %p46
        %p213 = pneg %p70
        %p214 = pneg %p67
        %p215 = pneg %p91
        %p216 = pneg %p88
        %p217 = pneg %p119
        %p218 = pneg %p116
        %s219 = sand.u32 %s106, 1
        %s220 = sand.u32 %s106, 1
        %s221 = smul.addr %s220, 32
        %s222 = scalar_lea.vmem [#allocation3], %s221
        %s223 = smul.u32 2, %s18
        %s224 = smul.u32 2, %s19
        %s225 = smul.u32 2, %s18
        %s226 = smul.u32 2, %s19
        %v227 = vld [vmem:[%s203] sm:$0xff]
        %v228 = vld [vmem:[%s203 + $0x8] sm:$0xff]
        %v229 = vunpack.c.l.bf16 %v227
        %v230 = vunpack.c.h.bf16 %v227
        %v231 = vunpack.c.l.bf16 %v228
        %v232 = vunpack.c.h.bf16 %v228
        %v233 = vld [vmem:[%s1] sm:$0xff]
        %235 = vset.pattern.permute.xlu0 0
        %236 = vperm.xlu0 %235, %v233
        %v237 = vpop.permute.xlu0 %236
        %v239 = vmul.f32 %v229, %v237
        %v240 = vmul.f32 %v230, %v237
        %v241 = vmul.f32 %v231, %v237
        %v242 = vmul.f32 %v232, %v237
        %v243 = vld [vmem:[%s2] sm:$0xff]
        %245 = vset.pattern.permute.xlu0 0
        %246 = vperm.xlu0 %245, %v243
        %v247 = vpop.permute.xlu0 %246
        %v249 = vadd.f32 %v239, %v247
        %v250 = vadd.f32 %v240, %v247
        %v251 = vadd.f32 %v241, %v247
        %v252 = vadd.f32 %v242, %v247
        %253 = vst [vmem:[%s222] sm:$0xff] %v249
        %254 = vst [vmem:[%s222 + $0x8] sm:$0xff] %v250
        %255 = vst [vmem:[%s222 + $0x10] sm:$0xff] %v251
        %256 = vst [vmem:[%s222 + $0x18] sm:$0xff] %v252
        %s257 = sand.u32 %s106, 1
        %s258 = sand.u32 %s106, 1
        %s259 = smul.addr %s258, 32
        %s260 = scalar_lea.vmem [#allocation3], %s259
        // Predicated region
        $region71: #{_inception_forward_impl.3} parent=65 // pred_check
          %p261 = pneg %p116
        $region72: #{_inception_forward_impl.3} parent=65 // pred_check_branch
          %263 = sbr.rel (%p261) target = $region74
        $region73: #{_inception_forward_impl.3} parent=65 // pred_region
          %s264 = smul.u32 2, %s18
          %s265 = smul.u32 2, %s19
          %s266 = smul.addr %s264, 4
          %s267 = sadd.s32 %s265, %s266
          %s268 = smul.addr %s267, 8
          %s269 = scalar_lea.vmem %s3, %s268
          // Predicated region
          $region75: #{_inception_forward_impl.3} parent=73 // pred_check
            _
          $region76: #{_inception_forward_impl.3} parent=73 // pred_check_branch
            %271 = sbr.rel (0) target = $region78
          $region77: #{_inception_forward_impl.3} parent=73 // pred_region
            // Predicated region
            $region79: #{_inception_forward_impl.3} parent=77 // pred_check
              _
            $region80: #{_inception_forward_impl.3} parent=77 // pred_check_branch
              %273 = sbr.rel (0) target = $region82
            $region81: #{_inception_forward_impl.3} parent=77 // pred_region
              loop: start=0, step=1, limit=1
              $region83: #{_inception_forward_impl.3} parent=81 // loop_pre_header
                _
              $region84: #{_inception_forward_impl.3} parent=81 // loop_header
                %s275 = sphi 0, %s279
                %p276 = scmp.ge.s32.totalorder %s275, 1
                %s280 = sphi %s260, %s260
                %s281 = sphi %s269, %s269
              $region85: #{_inception_forward_impl.3} parent=81 // loop_header_branch
                %278 = sbr.rel (%p276) target = $region89
              $region86: #{_inception_forward_impl.3} parent=81 // loop_body
                %v282 = vld [vmem:[%s280] sm:$0xff]
                %283 = vst [vmem:[%s281] sm:$0xff] %v282
                %v284 = vld [vmem:[%s280 + $0x8] sm:$0xff]
                %285 = vst [vmem:[%s281 + $0x8] sm:$0xff] %v284
                %v286 = vld [vmem:[%s280 + $0x10] sm:$0xff]
                %287 = vst [vmem:[%s281 + $0x20] sm:$0xff] %v286
                %v288 = vld [vmem:[%s280 + $0x18] sm:$0xff]
                %289 = vst [vmem:[%s281 + $0x28] sm:$0xff] %v288
              $region87: #{_inception_forward_impl.3} parent=81 // loop_footer
                %s279 = sadd.s32 1, %s275
              $region88: #{_inception_forward_impl.3} parent=81 // loop_footer_branch
                %274 = sbr.rel target = $region84
              $region89: #{_inception_forward_impl.3} parent=81 // loop_exit
                _
            $region82: #{_inception_forward_impl.3} parent=77 // pred_fallthru
              _
            // Predicated region
            $region90: #{_inception_forward_impl.3} parent=77 // pred_check
              _
            $region91: #{_inception_forward_impl.3} parent=77 // pred_check_branch
              %291 = sbr.rel target = $region93
            $region92: #{_inception_forward_impl.3} parent=77 // pred_region
              _
            $region93: #{_inception_forward_impl.3} parent=77 // pred_fallthru
              _
          $region78: #{_inception_forward_impl.3} parent=73 // pred_fallthru
            _
          %292 = vnop
        $region74: #{_inception_forward_impl.3} parent=65 // pred_fallthru
          _
      $region66: #{_inception_forward_impl.3} parent=5 // pred_fallthru
        _
      %p293 = scmp.le.s32.totalorder 2, %s9
      // Predicated region
      $region94: #{_inception_forward_impl.3} parent=5 // pred_check
        %p294 = pneg %p293
      $region95: #{_inception_forward_impl.3} parent=5 // pred_check_branch
        %296 = sbr.rel (%p294) target = $region97
      $region96: #{_inception_forward_impl.3} parent=5 // pred_region
        %s297 = ssub.s32 %s9, 2
        // Predicated region
        $region98: #{_inception_forward_impl.3} parent=96 // pred_check
          %p298 = pneg %p122
        $region99: #{_inception_forward_impl.3} parent=96 // pred_check_branch
          %300 = sbr.rel (%p298) target = $region101
        $region100: #{_inception_forward_impl.3} parent=96 // pred_region
          %s301 = sand.u32 %s107, 1
          %s302 = sand.u32 %s107, 1
          %s303 = smul.addr %s302, 32
          %s304 = scalar_lea.vmem [#allocation3], %s303
        $region101: #{_inception_forward_impl.3} parent=96 // pred_fallthru
          _
      $region97: #{_inception_forward_impl.3} parent=5 // pred_fallthru
        _
    $region6: #{_inception_forward_impl.3} parent=1 // loop_footer
      %s13 = sadd.s32 1, %s9
    $region7: #{_inception_forward_impl.3} parent=1 // loop_footer_branch
      %8 = sbr.rel target = $region3
    $region8: #{_inception_forward_impl.3} parent=1 // loop_exit
      _

</llo_original>
